<compile_context>
chip_gen: v7x
topology: tpu7x:2x2x1
jax: 0.10.0
libtpu: 0.0.40
codegen_flags: <defaults>
</compile_context>

<pallas_src>
import functools

import jax
import jax.numpy as jnp
from jax import lax
from jax.experimental import pallas as pl
from jax.experimental.pallas import tpu as pltpu


# ---------------------------------------------------------------------------
# Kernel: one grid step == one batch element.
# ---------------------------------------------------------------------------
def _prenorm_attention_kernel(n_heads, eps,
                              x_ref, g_ref, beta_ref,
                              wqkv_ref, bqkv_ref, wo_ref, bo_ref,
                              o_ref):
    S, D = x_ref.shape[1], x_ref.shape[2]
    Dh = D // n_heads
    scale = 1.0 / (Dh ** 0.5)

    # ---- PreNorm.norm : LayerNorm over the feature dim (f32 math) ----
    x = x_ref[0]                                                    # (S, D) f32
    mean = jnp.mean(x, axis=-1, keepdims=True)
    xc = x - mean
    var = jnp.mean(xc * xc, axis=-1, keepdims=True)
    xn = xc * lax.rsqrt(var + eps) * g_ref[...] + beta_ref[...]     # (S, D) f32

    # ---- fused QKV projection: bf16 operands, f32 MXU accumulation ----
    qkv = jnp.dot(xn.astype(jnp.bfloat16), wqkv_ref[...],
                  preferred_element_type=jnp.float32) + bqkv_ref[...]   # (S, 3D)

    # ---- per-head attention; head context folded straight into out_proj ----
    # No ctx scratch ref and no sub-128-lane ref stores: the only ref store is
    # the final lane-dense (S, D) output block.
    acc = jnp.zeros((S, D), jnp.float32)
    for h in range(n_heads):
        o0 = h * Dh
        qh = qkv[:, o0:o0 + Dh].astype(jnp.bfloat16)                 # (S, Dh)
        kh = qkv[:, D + o0:D + o0 + Dh].astype(jnp.bfloat16)
        vh = qkv[:, 2 * D + o0:2 * D + o0 + Dh].astype(jnp.bfloat16)

        s = jnp.einsum('qd,kd->qk', qh, kh,
                       preferred_element_type=jnp.float32) * scale  # (S, S) f32
        s = s - jnp.max(s, axis=-1, keepdims=True)
        p = jnp.exp(s)
        p = p * pl.reciprocal(jnp.sum(p, axis=-1, keepdims=True))    # exact recip
        ctx_h = jnp.einsum('qk,kd->qd', p.astype(jnp.bfloat16), vh,
                           preferred_element_type=jnp.float32)       # (S, Dh)
        acc = acc + jnp.dot(ctx_h.astype(jnp.bfloat16),
                            wo_ref[o0:o0 + Dh, :],
                            preferred_element_type=jnp.float32)      # (S, D)

    o_ref[0] = (acc + bo_ref[...]).astype(o_ref.dtype)


# ---------------------------------------------------------------------------
# One-time parameter preprocessing (NOT per forward call).
#   (y @ wq + bq) @ wiq + biq == y @ (wq @ wiq) + (bq @ wiq + biq)
# Folded in f32, matmul weights cast to bf16 once at the end.
# ---------------------------------------------------------------------------
def fuse_prenorm_attention_params(params, matmul_dtype=jnp.bfloat16):
    f32 = jnp.float32

    def fold(wn, bn, win, bin_):
        w = params[wn].astype(f32) @ params[win].astype(f32)
        b = params[bn].astype(f32) @ params[win].astype(f32) + params[bin_].astype(f32)
        return w, b

    wQ, bQ = fold("wq", "bq", "wiq", "biq")
    wK, bK = fold("wk", "bk", "wik", "bik")
    wV, bV = fold("wv", "bv", "wiv", "biv")
    return {
        "gamma": params["gamma"].astype(f32),
        "beta": params["beta"].astype(f32),
        "w_qkv": jnp.concatenate([wQ, wK, wV], axis=1).astype(matmul_dtype),  # (D, 3D)
        "b_qkv": jnp.concatenate([bQ, bK, bV], axis=1),                       # (1, 3D) f32
        "wo": params["wo"].astype(f32).astype(matmul_dtype),                  # (D, D)
        "bo": params["bo"].astype(f32),                                       # (1, D)
    }


def _vmem_limit_bytes(S, D, H):
    weights = 2 * (3 * D * D + D * D) + 4 * (3 * D + 3 * D)   # bf16 mats + f32 vecs
    blocks = 4 * 2 * 2 * S * D                                # x/out, double-buffered
    temps = 4 * (3 * S * D + H * S * S + 4 * S * D)           # qkv / scores / acc slack
    need = weights + blocks + temps
    return int(min(max(4 * need, 8 << 20), 48 << 20))         # stay under v7x's 64 MiB


def prenorm_attention_forward(x, fused, n_heads, eps=1e-5):
    """PreNorm(LayerNorm -> Attention). x: (B, S, D) f32; `fused` from
    fuse_prenorm_attention_params (call that once, reuse across steps)."""
    B, S, D = x.shape
    assert D % n_heads == 0

    kernel = functools.partial(_prenorm_attention_kernel, n_heads, eps)

    return pl.pallas_call(
        kernel,
        out_shape=jax.ShapeDtypeStruct((B, S, D), x.dtype),
        grid=(B,),
        in_specs=[
            pl.BlockSpec((1, S, D), lambda b: (b, 0, 0)),       # x (per-batch block)
            pl.BlockSpec((1, D), lambda b: (0, 0)),             # gamma   (resident)
            pl.BlockSpec((1, D), lambda b: (0, 0)),             # beta    (resident)
            pl.BlockSpec((D, 3 * D), lambda b: (0, 0)),         # w_qkv   (resident, bf16)
            pl.BlockSpec((1, 3 * D), lambda b: (0, 0)),         # b_qkv   (resident)
            pl.BlockSpec((D, D), lambda b: (0, 0)),             # wo      (resident, bf16)
            pl.BlockSpec((1, D), lambda b: (0, 0)),             # bo      (resident)
        ],
        out_specs=pl.BlockSpec((1, S, D), lambda b: (b, 0, 0)),
        compiler_params=pltpu.CompilerParams(
            dimension_semantics=("parallel",),
            vmem_limit_bytes=_vmem_limit_bytes(S, D, n_heads),
        ),
    )(x, fused["gamma"], fused["beta"], fused["w_qkv"], fused["b_qkv"],
      fused["wo"], fused["bo"])


# ---------------------------------------------------------------------------
# References
# ---------------------------------------------------------------------------
def prenorm_attention_reference(x, params, n_heads, eps=1e-5):
    """Pure-f32, unfused reference (PyTorch semantics)."""
    B, S, D = x.shape
    Dh = D // n_heads

    mean = jnp.mean(x, axis=-1, keepdims=True)
    var = jnp.mean((x - mean) ** 2, axis=-1, keepdims=True)
    xn = (x - mean) / jnp.sqrt(var + eps) * params["gamma"] + params["beta"]

    def lin(t, w, b):
        return t @ w + b

    q = lin(lin(xn, params["wq"], params["bq"]), params["wiq"], params["biq"])
    k = lin(lin(xn, params["wk"], params["bk"]), params["wik"], params["bik"])
    v = lin(lin(xn, params["wv"], params["bv"]), params["wiv"], params["biv"])

    def split(t):
        return t.reshape(B, S, n_heads, Dh).transpose(0, 2, 1, 3)

    qh, kh, vh = split(q), split(k), split(v)
    s = jnp.einsum("bhqd,bhkd->bhqk", qh, kh) / (Dh ** 0.5)
    p = jax.nn.softmax(s, axis=-1)
    ctx = jnp.einsum("bhqk,bhkd->bhqd", p, vh)
    ctx = ctx.transpose(0, 2, 1, 3).reshape(B, S, D)
    return ctx @ params["wo"] + params["bo"]


def prenorm_attention_matched(x, fused, n_heads, eps=1e-5):
    """Plain-JAX replica of the kernel's numerics (fused bf16 weights)."""
    B, S, D = x.shape
    H, Dh = n_heads, D // n_heads
    mean = jnp.mean(x, axis=-1, keepdims=True)
    xc = x - mean
    var = jnp.mean(xc * xc, axis=-1, keepdims=True)
    xn = xc * lax.rsqrt(var + eps) * fused["gamma"] + fused["beta"]
    qkv = jnp.einsum("bsd,df->bsf", xn.astype(jnp.bfloat16), fused["w_qkv"],
                     preferred_element_type=jnp.float32) + fused["b_qkv"]

    def split(t):
        return t.reshape(B, S, H, Dh).transpose(0, 2, 1, 3).astype(jnp.bfloat16)

    qh, kh, vh = split(qkv[..., :D]), split(qkv[..., D:2 * D]), split(qkv[..., 2 * D:])
    s = jnp.einsum("bhqd,bhkd->bhqk", qh, kh,
                   preferred_element_type=jnp.float32) / (Dh ** 0.5)
    p = jax.nn.softmax(s, axis=-1)
    ctx = jnp.einsum("bhqk,bhkd->bhqd", p.astype(jnp.bfloat16), vh,
                     preferred_element_type=jnp.float32)
    ctx = ctx.transpose(0, 2, 1, 3).reshape(B, S, D)
    return jnp.einsum("bsd,df->bsf", ctx.astype(jnp.bfloat16), fused["wo"],
                      preferred_element_type=jnp.float32) + fused["bo"]


def init_params(key, dim):
    names_mat = ["wq", "wk", "wv", "wiq", "wik", "wiv", "wo"]
    names_bias = ["bq", "bk", "bv", "biq", "bik", "biv", "bo"]
    keys = jax.random.split(key, len(names_mat) + len(names_bias) + 2)
    params = {}
    for i, n in enumerate(names_mat):
        params[n] = (jax.random.normal(keys[i], (dim, dim), jnp.float32)
                     * (1.0 / dim ** 0.5))
    for j, n in enumerate(names_bias):
        params[n] = (jax.random.normal(keys[len(names_mat) + j], (1, dim),
                                       jnp.float32) * 0.02)
    params["gamma"] = 1.0 + 0.1 * jax.random.normal(keys[-2], (1, dim), jnp.float32)
    params["beta"] = 0.02 * jax.random.normal(keys[-1], (1, dim), jnp.float32)
    return params


if __name__ == "__main__":
    B, S, D, H = 2, 8, 32, 4   # batch, seq, embed dim, heads (dim % heads == 0)
    key = jax.random.PRNGKey(0)
    kx, kp = jax.random.split(key)

    x = jax.random.normal(kx, (B, S, D), jnp.float32)
    params = init_params(kp, D)

    # One-time parameter preprocessing (not part of the per-call forward).
    fused = fuse_prenorm_attention_params(params)

    out = prenorm_attention_forward(x, fused, H)
    out = jax.block_until_ready(out)
    assert out.shape == (B, S, D)

    # Matched-precision reference: same fused bf16 weights / f32 accumulation
    # as the kernel -> should agree closely.
    ref_matched = prenorm_attention_matched(x, fused, H)
    err_matched = float(jnp.max(jnp.abs(out - ref_matched)))
    assert err_matched < 2e-2, f"mismatch vs matched reference (err={err_matched})"

    # Full-f32 unfused reference (PyTorch semantics): gap is bf16 matmul
    # rounding (intentional, per review); sanity bound only.
    ref_f32 = prenorm_attention_reference(x, params, H)
    err_f32 = float(jnp.max(jnp.abs(out - ref_f32)))
    assert err_f32 < 1e-1, f"mismatch vs f32 reference (err={err_f32})"

    print("KERNEL_OK")
</pallas_src>

<mosaic_0001>
module attributes {stable_mosaic.version = 11 : i64} {
  func.func @_prenorm_attention_kernel(%arg0: i32, %arg1: memref<1x8x32xf32, #tpu.memory_space<vmem>>, %arg2: memref<1x32xf32, #tpu.memory_space<vmem>>, %arg3: memref<1x32xf32, #tpu.memory_space<vmem>>, %arg4: memref<32x96xbf16, #tpu.memory_space<vmem>>, %arg5: memref<1x96xf32, #tpu.memory_space<vmem>>, %arg6: memref<32x32xbf16, #tpu.memory_space<vmem>>, %arg7: memref<1x32xf32, #tpu.memory_space<vmem>>, %arg8: memref<1x8x32xf32, #tpu.memory_space<vmem>>) attributes {dimension_semantics = [#tpu.dimension_semantics<parallel>], iteration_bounds = array<i64: 2>, scalar_prefetch = 0 : i64, scratch_operands = 0 : i64, tpu.core_type = #tpu.core_type<tc>, window_params = [{transform_indices = @transform_0, window_bounds = array<i64: 1, 8, 32>}, {pipeline_mode = #tpu.pipeline_mode<synchronous>, transform_indices = @transform_1, window_bounds = array<i64: 1, 32>}, {pipeline_mode = #tpu.pipeline_mode<synchronous>, transform_indices = @transform_2, window_bounds = array<i64: 1, 32>}, {pipeline_mode = #tpu.pipeline_mode<synchronous>, transform_indices = @transform_3, window_bounds = array<i64: 32, 96>}, {pipeline_mode = #tpu.pipeline_mode<synchronous>, transform_indices = @transform_4, window_bounds = array<i64: 1, 96>}, {pipeline_mode = #tpu.pipeline_mode<synchronous>, transform_indices = @transform_5, window_bounds = array<i64: 32, 32>}, {pipeline_mode = #tpu.pipeline_mode<synchronous>, transform_indices = @transform_6, window_bounds = array<i64: 1, 32>}, {transform_indices = @transform_7, window_bounds = array<i64: 1, 8, 32>}]} {
    %c0 = arith.constant 0 : index
    %c0_0 = arith.constant 0 : index
    %c0_1 = arith.constant 0 : index
    %0 = vector.load %arg1[%c0, %c0_0, %c0_1] : memref<1x8x32xf32, #tpu.memory_space<vmem>>, vector<1x8x32xf32>
    %1 = vector.shape_cast %0 : vector<1x8x32xf32> to vector<8x32xf32>
    %cst = arith.constant dense<0.000000e+00> : vector<8xf32>
    %2 = vector.multi_reduction <add>, %1, %cst [1] : vector<8x32xf32> to vector<8xf32>
    %3 = vector.shape_cast %2 : vector<8xf32> to vector<8x1xf32>
    %cst_2 = arith.constant 3.200000e+01 : f32
    %4 = vector.broadcast %cst_2 : f32 to vector<8x1xf32>
    %5 = arith.divf %3, %4 : vector<8x1xf32>
    %6 = vector.broadcast %5 : vector<8x1xf32> to vector<8x32xf32>
    %7 = arith.subf %1, %6 : vector<8x32xf32>
    %8 = arith.mulf %7, %7 : vector<8x32xf32>
    %cst_3 = arith.constant dense<0.000000e+00> : vector<8xf32>
    %9 = vector.multi_reduction <add>, %8, %cst_3 [1] : vector<8x32xf32> to vector<8xf32>
    %10 = vector.shape_cast %9 : vector<8xf32> to vector<8x1xf32>
    %cst_4 = arith.constant 3.200000e+01 : f32
    %11 = vector.broadcast %cst_4 : f32 to vector<8x1xf32>
    %12 = arith.divf %10, %11 : vector<8x1xf32>
    %cst_5 = arith.constant 9.99999974E-6 : f32
    %13 = vector.broadcast %cst_5 : f32 to vector<8x1xf32>
    %14 = arith.addf %12, %13 : vector<8x1xf32>
    %15 = math.rsqrt %14 : vector<8x1xf32>
    %16 = vector.broadcast %15 : vector<8x1xf32> to vector<8x32xf32>
    %17 = arith.mulf %7, %16 : vector<8x32xf32>
    %c0_6 = arith.constant 0 : index
    %c0_7 = arith.constant 0 : index
    %18 = vector.load %arg2[%c0_6, %c0_7] : memref<1x32xf32, #tpu.memory_space<vmem>>, vector<1x32xf32>
    %19 = vector.broadcast %18 : vector<1x32xf32> to vector<8x32xf32>
    %20 = arith.mulf %17, %19 : vector<8x32xf32>
    %c0_8 = arith.constant 0 : index
    %c0_9 = arith.constant 0 : index
    %21 = vector.load %arg3[%c0_8, %c0_9] : memref<1x32xf32, #tpu.memory_space<vmem>>, vector<1x32xf32>
    %22 = vector.broadcast %21 : vector<1x32xf32> to vector<8x32xf32>
    %23 = arith.addf %20, %22 : vector<8x32xf32>
    %24 = arith.truncf %23 : vector<8x32xf32> to vector<8x32xbf16>
    %c0_10 = arith.constant 0 : index
    %c0_11 = arith.constant 0 : index
    %25 = vector.load %arg4[%c0_10, %c0_11] : memref<32x96xbf16, #tpu.memory_space<vmem>>, vector<32x96xbf16>
    %cst_12 = arith.constant dense<0.000000e+00> : vector<8x96xf32>
    %26 = tpu.matmul %24, %25, %cst_12 {dimension_numbers = #tpu.dot_dimension_numbers<[1], [0], [0], [1], [0, 0, 1, 1], [], []>} : vector<8x32xbf16>, vector<32x96xbf16>, vector<8x96xf32> -> vector<8x96xf32>
    %c0_13 = arith.constant 0 : index
    %c0_14 = arith.constant 0 : index
    %27 = vector.load %arg5[%c0_13, %c0_14] : memref<1x96xf32, #tpu.memory_space<vmem>>, vector<1x96xf32>
    %28 = vector.broadcast %27 : vector<1x96xf32> to vector<8x96xf32>
    %29 = arith.addf %26, %28 : vector<8x96xf32>
    %cst_15 = arith.constant 0.000000e+00 : f32
    %30 = vector.broadcast %cst_15 : f32 to vector<8x32xf32>
    %31 = vector.extract_strided_slice %29 {offsets = [0, 0], sizes = [8, 8], strides = [1, 1]} : vector<8x96xf32> to vector<8x8xf32>
    %32 = arith.truncf %31 : vector<8x8xf32> to vector<8x8xbf16>
    %33 = vector.extract_strided_slice %29 {offsets = [0, 32], sizes = [8, 8], strides = [1, 1]} : vector<8x96xf32> to vector<8x8xf32>
    %34 = arith.truncf %33 : vector<8x8xf32> to vector<8x8xbf16>
    %35 = vector.extract_strided_slice %29 {offsets = [0, 64], sizes = [8, 8], strides = [1, 1]} : vector<8x96xf32> to vector<8x8xf32>
    %36 = arith.truncf %35 : vector<8x8xf32> to vector<8x8xbf16>
    "tpu.trace_start"() <{level = 10 : i32, message = "qd,kd->qk"}> : () -> ()
    %cst_16 = arith.constant dense<0.000000e+00> : vector<8x8xf32>
    %37 = tpu.matmul %32, %34, %cst_16 {dimension_numbers = #tpu.dot_dimension_numbers<[1], [1], [0], [0], [0, 0, 1, 0], [], []>} : vector<8x8xbf16>, vector<8x8xbf16>, vector<8x8xf32> -> vector<8x8xf32>
    "tpu.trace_stop"() : () -> ()
    %cst_17 = arith.constant 0.353553385 : f32
    %38 = vector.broadcast %cst_17 : f32 to vector<8x8xf32>
    %39 = arith.mulf %37, %38 : vector<8x8xf32>
    %cst_18 = arith.constant dense<0xFF800000> : vector<8xf32>
    %40 = vector.multi_reduction <maximumf>, %39, %cst_18 [1] : vector<8x8xf32> to vector<8xf32>
    %41 = vector.shape_cast %40 : vector<8xf32> to vector<8x1xf32>
    %42 = vector.broadcast %41 : vector<8x1xf32> to vector<8x8xf32>
    %43 = arith.subf %39, %42 : vector<8x8xf32>
    %44 = math.exp %43 : vector<8x8xf32>
    %cst_19 = arith.constant dense<0.000000e+00> : vector<8xf32>
    %45 = vector.multi_reduction <add>, %44, %cst_19 [1] : vector<8x8xf32> to vector<8xf32>
    %46 = vector.shape_cast %45 : vector<8xf32> to vector<8x1xf32>
    %47 = tpu.reciprocal %46 : vector<8x1xf32> -> vector<8x1xf32>
    %48 = vector.broadcast %47 : vector<8x1xf32> to vector<8x8xf32>
    %49 = arith.mulf %44, %48 : vector<8x8xf32>
    %50 = arith.truncf %49 : vector<8x8xf32> to vector<8x8xbf16>
    "tpu.trace_start"() <{level = 10 : i32, message = "qk,kd->qd"}> : () -> ()
    %cst_20 = arith.constant dense<0.000000e+00> : vector<8x8xf32>
    %51 = tpu.matmul %50, %36, %cst_20 {dimension_numbers = #tpu.dot_dimension_numbers<[1], [0], [0], [1], [0, 0, 1, 1], [], []>} : vector<8x8xbf16>, vector<8x8xbf16>, vector<8x8xf32> -> vector<8x8xf32>
    "tpu.trace_stop"() : () -> ()
    %52 = arith.truncf %51 : vector<8x8xf32> to vector<8x8xbf16>
    %c0_21 = arith.constant 0 : index
    %c0_22 = arith.constant 0 : index
    %53 = vector.load %arg6[%c0_21, %c0_22] : memref<32x32xbf16, #tpu.memory_space<vmem>>, vector<8x32xbf16>
    %cst_23 = arith.constant dense<0.000000e+00> : vector<8x32xf32>
    %54 = tpu.matmul %52, %53, %cst_23 {dimension_numbers = #tpu.dot_dimension_numbers<[1], [0], [0], [1], [0, 0, 1, 1], [], []>} : vector<8x8xbf16>, vector<8x32xbf16>, vector<8x32xf32> -> vector<8x32xf32>
    %55 = arith.addf %30, %54 : vector<8x32xf32>
    %56 = vector.extract_strided_slice %29 {offsets = [0, 8], sizes = [8, 8], strides = [1, 1]} : vector<8x96xf32> to vector<8x8xf32>
    %57 = arith.truncf %56 : vector<8x8xf32> to vector<8x8xbf16>
    %58 = vector.extract_strided_slice %29 {offsets = [0, 40], sizes = [8, 8], strides = [1, 1]} : vector<8x96xf32> to vector<8x8xf32>
    %59 = arith.truncf %58 : vector<8x8xf32> to vector<8x8xbf16>
    %60 = vector.extract_strided_slice %29 {offsets = [0, 72], sizes = [8, 8], strides = [1, 1]} : vector<8x96xf32> to vector<8x8xf32>
    %61 = arith.truncf %60 : vector<8x8xf32> to vector<8x8xbf16>
    "tpu.trace_start"() <{level = 10 : i32, message = "qd,kd->qk"}> : () -> ()
    %cst_24 = arith.constant dense<0.000000e+00> : vector<8x8xf32>
    %62 = tpu.matmul %57, %59, %cst_24 {dimension_numbers = #tpu.dot_dimension_numbers<[1], [1], [0], [0], [0, 0, 1, 0], [], []>} : vector<8x8xbf16>, vector<8x8xbf16>, vector<8x8xf32> -> vector<8x8xf32>
    "tpu.trace_stop"() : () -> ()
    %cst_25 = arith.constant 0.353553385 : f32
    %63 = vector.broadcast %cst_25 : f32 to vector<8x8xf32>
    %64 = arith.mulf %62, %63 : vector<8x8xf32>
    %cst_26 = arith.constant dense<0xFF800000> : vector<8xf32>
    %65 = vector.multi_reduction <maximumf>, %64, %cst_26 [1] : vector<8x8xf32> to vector<8xf32>
    %66 = vector.shape_cast %65 : vector<8xf32> to vector<8x1xf32>
    %67 = vector.broadcast %66 : vector<8x1xf32> to vector<8x8xf32>
    %68 = arith.subf %64, %67 : vector<8x8xf32>
    %69 = math.exp %68 : vector<8x8xf32>
    %cst_27 = arith.constant dense<0.000000e+00> : vector<8xf32>
    %70 = vector.multi_reduction <add>, %69, %cst_27 [1] : vector<8x8xf32> to vector<8xf32>
    %71 = vector.shape_cast %70 : vector<8xf32> to vector<8x1xf32>
    %72 = tpu.reciprocal %71 : vector<8x1xf32> -> vector<8x1xf32>
    %73 = vector.broadcast %72 : vector<8x1xf32> to vector<8x8xf32>
    %74 = arith.mulf %69, %73 : vector<8x8xf32>
    %75 = arith.truncf %74 : vector<8x8xf32> to vector<8x8xbf16>
    "tpu.trace_start"() <{level = 10 : i32, message = "qk,kd->qd"}> : () -> ()
    %cst_28 = arith.constant dense<0.000000e+00> : vector<8x8xf32>
    %76 = tpu.matmul %75, %61, %cst_28 {dimension_numbers = #tpu.dot_dimension_numbers<[1], [0], [0], [1], [0, 0, 1, 1], [], []>} : vector<8x8xbf16>, vector<8x8xbf16>, vector<8x8xf32> -> vector<8x8xf32>
    "tpu.trace_stop"() : () -> ()
    %77 = arith.truncf %76 : vector<8x8xf32> to vector<8x8xbf16>
    %c8 = arith.constant 8 : index
    %c0_29 = arith.constant 0 : index
    %78 = vector.load %arg6[%c8, %c0_29] : memref<32x32xbf16, #tpu.memory_space<vmem>>, vector<8x32xbf16>
    %cst_30 = arith.constant dense<0.000000e+00> : vector<8x32xf32>
    %79 = tpu.matmul %77, %78, %cst_30 {dimension_numbers = #tpu.dot_dimension_numbers<[1], [0], [0], [1], [0, 0, 1, 1], [], []>} : vector<8x8xbf16>, vector<8x32xbf16>, vector<8x32xf32> -> vector<8x32xf32>
    %80 = arith.addf %55, %79 : vector<8x32xf32>
    %81 = vector.extract_strided_slice %29 {offsets = [0, 16], sizes = [8, 8], strides = [1, 1]} : vector<8x96xf32> to vector<8x8xf32>
    %82 = arith.truncf %81 : vector<8x8xf32> to vector<8x8xbf16>
    %83 = vector.extract_strided_slice %29 {offsets = [0, 48], sizes = [8, 8], strides = [1, 1]} : vector<8x96xf32> to vector<8x8xf32>
    %84 = arith.truncf %83 : vector<8x8xf32> to vector<8x8xbf16>
    %85 = vector.extract_strided_slice %29 {offsets = [0, 80], sizes = [8, 8], strides = [1, 1]} : vector<8x96xf32> to vector<8x8xf32>
    %86 = arith.truncf %85 : vector<8x8xf32> to vector<8x8xbf16>
    "tpu.trace_start"() <{level = 10 : i32, message = "qd,kd->qk"}> : () -> ()
    %cst_31 = arith.constant dense<0.000000e+00> : vector<8x8xf32>
    %87 = tpu.matmul %82, %84, %cst_31 {dimension_numbers = #tpu.dot_dimension_numbers<[1], [1], [0], [0], [0, 0, 1, 0], [], []>} : vector<8x8xbf16>, vector<8x8xbf16>, vector<8x8xf32> -> vector<8x8xf32>
    "tpu.trace_stop"() : () -> ()
    %cst_32 = arith.constant 0.353553385 : f32
    %88 = vector.broadcast %cst_32 : f32 to vector<8x8xf32>
    %89 = arith.mulf %87, %88 : vector<8x8xf32>
    %cst_33 = arith.constant dense<0xFF800000> : vector<8xf32>
    %90 = vector.multi_reduction <maximumf>, %89, %cst_33 [1] : vector<8x8xf32> to vector<8xf32>
    %91 = vector.shape_cast %90 : vector<8xf32> to vector<8x1xf32>
    %92 = vector.broadcast %91 : vector<8x1xf32> to vector<8x8xf32>
    %93 = arith.subf %89, %92 : vector<8x8xf32>
    %94 = math.exp %93 : vector<8x8xf32>
    %cst_34 = arith.constant dense<0.000000e+00> : vector<8xf32>
    %95 = vector.multi_reduction <add>, %94, %cst_34 [1] : vector<8x8xf32> to vector<8xf32>
    %96 = vector.shape_cast %95 : vector<8xf32> to vector<8x1xf32>
    %97 = tpu.reciprocal %96 : vector<8x1xf32> -> vector<8x1xf32>
    %98 = vector.broadcast %97 : vector<8x1xf32> to vector<8x8xf32>
    %99 = arith.mulf %94, %98 : vector<8x8xf32>
    %100 = arith.truncf %99 : vector<8x8xf32> to vector<8x8xbf16>
    "tpu.trace_start"() <{level = 10 : i32, message = "qk,kd->qd"}> : () -> ()
    %cst_35 = arith.constant dense<0.000000e+00> : vector<8x8xf32>
    %101 = tpu.matmul %100, %86, %cst_35 {dimension_numbers = #tpu.dot_dimension_numbers<[1], [0], [0], [1], [0, 0, 1, 1], [], []>} : vector<8x8xbf16>, vector<8x8xbf16>, vector<8x8xf32> -> vector<8x8xf32>
    "tpu.trace_stop"() : () -> ()
    %102 = arith.truncf %101 : vector<8x8xf32> to vector<8x8xbf16>
    %c16 = arith.constant 16 : index
    %c0_36 = arith.constant 0 : index
    %103 = vector.load %arg6[%c16, %c0_36] : memref<32x32xbf16, #tpu.memory_space<vmem>>, vector<8x32xbf16>
    %cst_37 = arith.constant dense<0.000000e+00> : vector<8x32xf32>
    %104 = tpu.matmul %102, %103, %cst_37 {dimension_numbers = #tpu.dot_dimension_numbers<[1], [0], [0], [1], [0, 0, 1, 1], [], []>} : vector<8x8xbf16>, vector<8x32xbf16>, vector<8x32xf32> -> vector<8x32xf32>
    %105 = arith.addf %80, %104 : vector<8x32xf32>
    %106 = vector.extract_strided_slice %29 {offsets = [0, 24], sizes = [8, 8], strides = [1, 1]} : vector<8x96xf32> to vector<8x8xf32>
    %107 = arith.truncf %106 : vector<8x8xf32> to vector<8x8xbf16>
    %108 = vector.extract_strided_slice %29 {offsets = [0, 56], sizes = [8, 8], strides = [1, 1]} : vector<8x96xf32> to vector<8x8xf32>
    %109 = arith.truncf %108 : vector<8x8xf32> to vector<8x8xbf16>
    %110 = vector.extract_strided_slice %29 {offsets = [0, 88], sizes = [8, 8], strides = [1, 1]} : vector<8x96xf32> to vector<8x8xf32>
    %111 = arith.truncf %110 : vector<8x8xf32> to vector<8x8xbf16>
    "tpu.trace_start"() <{level = 10 : i32, message = "qd,kd->qk"}> : () -> ()
    %cst_38 = arith.constant dense<0.000000e+00> : vector<8x8xf32>
    %112 = tpu.matmul %107, %109, %cst_38 {dimension_numbers = #tpu.dot_dimension_numbers<[1], [1], [0], [0], [0, 0, 1, 0], [], []>} : vector<8x8xbf16>, vector<8x8xbf16>, vector<8x8xf32> -> vector<8x8xf32>
    "tpu.trace_stop"() : () -> ()
    %cst_39 = arith.constant 0.353553385 : f32
    %113 = vector.broadcast %cst_39 : f32 to vector<8x8xf32>
    %114 = arith.mulf %112, %113 : vector<8x8xf32>
    %cst_40 = arith.constant dense<0xFF800000> : vector<8xf32>
    %115 = vector.multi_reduction <maximumf>, %114, %cst_40 [1] : vector<8x8xf32> to vector<8xf32>
    %116 = vector.shape_cast %115 : vector<8xf32> to vector<8x1xf32>
    %117 = vector.broadcast %116 : vector<8x1xf32> to vector<8x8xf32>
    %118 = arith.subf %114, %117 : vector<8x8xf32>
    %119 = math.exp %118 : vector<8x8xf32>
    %cst_41 = arith.constant dense<0.000000e+00> : vector<8xf32>
    %120 = vector.multi_reduction <add>, %119, %cst_41 [1] : vector<8x8xf32> to vector<8xf32>
    %121 = vector.shape_cast %120 : vector<8xf32> to vector<8x1xf32>
    %122 = tpu.reciprocal %121 : vector<8x1xf32> -> vector<8x1xf32>
    %123 = vector.broadcast %122 : vector<8x1xf32> to vector<8x8xf32>
    %124 = arith.mulf %119, %123 : vector<8x8xf32>
    %125 = arith.truncf %124 : vector<8x8xf32> to vector<8x8xbf16>
    "tpu.trace_start"() <{level = 10 : i32, message = "qk,kd->qd"}> : () -> ()
    %cst_42 = arith.constant dense<0.000000e+00> : vector<8x8xf32>
    %126 = tpu.matmul %125, %111, %cst_42 {dimension_numbers = #tpu.dot_dimension_numbers<[1], [0], [0], [1], [0, 0, 1, 1], [], []>} : vector<8x8xbf16>, vector<8x8xbf16>, vector<8x8xf32> -> vector<8x8xf32>
    "tpu.trace_stop"() : () -> ()
    %127 = arith.truncf %126 : vector<8x8xf32> to vector<8x8xbf16>
    %c24 = arith.constant 24 : index
    %c0_43 = arith.constant 0 : index
    %128 = vector.load %arg6[%c24, %c0_43] : memref<32x32xbf16, #tpu.memory_space<vmem>>, vector<8x32xbf16>
    %cst_44 = arith.constant dense<0.000000e+00> : vector<8x32xf32>
    %129 = tpu.matmul %127, %128, %cst_44 {dimension_numbers = #tpu.dot_dimension_numbers<[1], [0], [0], [1], [0, 0, 1, 1], [], []>} : vector<8x8xbf16>, vector<8x32xbf16>, vector<8x32xf32> -> vector<8x32xf32>
    %130 = arith.addf %105, %129 : vector<8x32xf32>
    %c0_45 = arith.constant 0 : index
    %c0_46 = arith.constant 0 : index
    %131 = vector.load %arg7[%c0_45, %c0_46] : memref<1x32xf32, #tpu.memory_space<vmem>>, vector<1x32xf32>
    %132 = vector.broadcast %131 : vector<1x32xf32> to vector<8x32xf32>
    %133 = arith.addf %130, %132 : vector<8x32xf32>
    %c0_47 = arith.constant 0 : index
    %c0_48 = arith.constant 0 : index
    %c0_49 = arith.constant 0 : index
    %134 = vector.load %arg8[%c0_47, %c0_48, %c0_49] : memref<1x8x32xf32, #tpu.memory_space<vmem>>, vector<1x8x32xf32>
    %135 = vector.shape_cast %134 : vector<1x8x32xf32> to vector<8x32xf32>
    %136 = vector.shape_cast %133 : vector<8x32xf32> to vector<1x8x32xf32>
    tpu.vector_store %arg8[%c0_47, %c0_48, %c0_49], %136 {strides = array<i32>} : memref<1x8x32xf32, #tpu.memory_space<vmem>>, vector<1x8x32xf32>,
    return
  }
  func.func @transform_0(%arg0: i32) -> (i32, i32, i32) {
    %c0_i32 = arith.constant 0 : i32
    %c0_i32_0 = arith.constant 0 : i32
    %c0_i32_1 = arith.constant 0 : i32
    return %arg0, %c0_i32, %c0_i32_0 : i32, i32, i32
  }
  func.func @transform_1(%arg0: i32) -> (i32, i32) {
    %c0_i32 = arith.constant 0 : i32
    %c0_i32_0 = arith.constant 0 : i32
    %c0_i32_1 = arith.constant 0 : i32
    return %c0_i32, %c0_i32_0 : i32, i32
  }
  func.func @transform_2(%arg0: i32) -> (i32, i32) {
    %c0_i32 = arith.constant 0 : i32
    %c0_i32_0 = arith.constant 0 : i32
    %c0_i32_1 = arith.constant 0 : i32
    return %c0_i32, %c0_i32_0 : i32, i32
  }
  func.func @transform_3(%arg0: i32) -> (i32, i32) {
    %c0_i32 = arith.constant 0 : i32
    %c0_i32_0 = arith.constant 0 : i32
    %c0_i32_1 = arith.constant 0 : i32
    return %c0_i32, %c0_i32_0 : i32, i32
  }
  func.func @transform_4(%arg0: i32) -> (i32, i32) {
    %c0_i32 = arith.constant 0 : i32
    %c0_i32_0 = arith.constant 0 : i32
    %c0_i32_1 = arith.constant 0 : i32
    return %c0_i32, %c0_i32_0 : i32, i32
  }
  func.func @transform_5(%arg0: i32) -> (i32, i32) {
    %c0_i32 = arith.constant 0 : i32
    %c0_i32_0 = arith.constant 0 : i32
    %c0_i32_1 = arith.constant 0 : i32
    return %c0_i32, %c0_i32_0 : i32, i32
  }
  func.func @transform_6(%arg0: i32) -> (i32, i32) {
    %c0_i32 = arith.constant 0 : i32
    %c0_i32_0 = arith.constant 0 : i32
    %c0_i32_1 = arith.constant 0 : i32
    return %c0_i32, %c0_i32_0 : i32, i32
  }
  func.func @transform_7(%arg0: i32) -> (i32, i32, i32) {
    %c0_i32 = arith.constant 0 : i32
    %c0_i32_0 = arith.constant 0 : i32
    %c0_i32_1 = arith.constant 0 : i32
    return %arg0, %c0_i32, %c0_i32_0 : i32, i32, i32
  }
}

</mosaic_0001>

<llo_original>
// kernel: tpu_custom_call.1
$region0: #{tpu_custom_call.1}
  #allocation0 [shape = 'u32[]', space=smem, size = 0x4, offset = 0x4, fixed_abs, tag = 'smem constant byte address 0x4 - core index']
  #allocation1 [shape = 'u32[144,128]{1,0:T(1,128)}', space=vmem, size = 0x12000, scoped, tag = 'internal scratch']
  %s0 = inlined_call_operand.hbm [shape: f32[2,8,32], index: 0, kind: input, shape index: {}]
  %s1 = inlined_call_operand.vmem [shape: f32[1,32], index: 1, kind: input, shape index: {}]
  %s2 = inlined_call_operand.vmem [shape: f32[1,32], index: 2, kind: input, shape index: {}]
  %s3 = inlined_call_operand.hbm [shape: bf16[32,96], index: 3, kind: input, shape index: {}]
  %s4 = inlined_call_operand.hbm [shape: f32[1,96], index: 4, kind: input, shape index: {}]
  %s5 = inlined_call_operand.vmem [shape: bf16[32,32], index: 5, kind: input, shape index: {}]
  %s6 = inlined_call_operand.vmem [shape: f32[1,32], index: 6, kind: input, shape index: {}]
  %s7 = inlined_call_operand.hbm [shape: f32[2,8,32], index: 7, kind: output, shape index: {}]
  %s8 = sld [smem:[#allocation0]]
  $region73: #{tpu_custom_call.1} parent=0
    _
  %s10 = ssub.s32 1, %s8
  %s11 = scalar_select 0, %s10, %s8
  $region1: #{tpu_custom_call.1} parent=0
    #allocation2 [shape = 'u8[8192]{0}', space=vmem, size = 0x2000, scoped, tag = 'input window, operand 0']
    #allocation3 [shape = 's32[2]{0}', space=sflag, size = 0x8, scoped, tag = 'scoped memory for tpu_custom_call.1']
    #allocation4 [shape = 's32[2]{0}', space=sflag, size = 0x8, scoped, tag = 'scoped memory for tpu_custom_call.1']
    #allocation5 [shape = 'u8[8192]{0}', space=vmem, size = 0x2000, scoped, tag = 'input window, operand 3, single buffered']
    #allocation6 [shape = 's32[1]{0}', space=sflag, size = 0x4, scoped, tag = 'scoped memory for tpu_custom_call.1']
    #allocation7 [shape = 'u8[512]{0}', space=vmem, size = 0x400, scoped, tag = 'input window, operand 4, single buffered']
    #allocation8 [shape = 'u8[8192]{0}', space=vmem, size = 0x2000, scoped, tag = 'output window, operand 0']
    %12 = vsyncpa [#allocation3], 0
    %s13 = scalar_lea.sflag [#allocation3], 1
    %14 = vsyncpa %s13, 0
    %15 = vsyncpa [#allocation6], 0
    %16 = vsyncpa [#allocation4], 0
    %s17 = scalar_lea.sflag [#allocation4], 1
    %18 = vsyncpa %s17, 0
    loop: start=0, step=1, limit=4
    $region2: #{tpu_custom_call.1} parent=1 // loop_pre_header
      _
    $region3: #{tpu_custom_call.1} parent=1 // loop_header
      %s20 = sphi 0, %s24
      %p21 = scmp.ge.s32.totalorder %s20, 4
      %s30 = sphi 0, %s32
      %s33 = sphi 0, %s30
      %s34 = sphi 0, %s33
      %s50 = sphi 0, %s34
      %s54 = sphi 0, %s54
      %s56 = sphi 0, %s54
      %s57 = sphi 0, %s56
      %s71 = sphi 0, %s57
      %s75 = sphi 0, %s75
      %s77 = sphi 0, %s75
      %s78 = sphi 0, %s77
      %s92 = sphi 0, %s78
      %s96 = sphi 0, %s96
      %s98 = sphi 0, %s96
      %s99 = sphi 0, %s98
      %s113 = sphi 0, %s99
      %s117 = sphi 0, %s117
      %s119 = sphi 0, %s117
      %s120 = sphi 0, %s119
      %s134 = sphi 0, %s120
      %s138 = sphi 0, %s138
      %s140 = sphi 0, %s138
      %s141 = sphi 0, %s140
      %s155 = sphi 0, %s141
      %s159 = sphi 0, %s159
      %s161 = sphi 0, %s159
      %s162 = sphi 0, %s161
      %s176 = sphi 0, %s162
      %s182 = sphi 0, %s184
      %s185 = sphi 0, %s182
      %s186 = sphi 0, %s185
      %s202 = sphi 0, %s186
    $region4: #{tpu_custom_call.1} parent=1 // loop_header_branch
      %23 = sbr.rel (%p21) target = $region8
    $region5: #{tpu_custom_call.1} parent=1 // loop_body
      %s25 = ssub.s32 %s20, 1
      %s26 = ssub.s32 %s20, 2
      %s27 = sadd.s32 %s20, 1
      %s28 = ssub.s32 %s20, %s27
      %p29 = scmp.eq.s32.totalorder %s28, 0
      %s31 = sadd.s32 %s30, 1
      %s32 = scalar_select %p29, %s30, %s31
      %p35 = pneg %p29
      %p36 = scmp.eq.s32.totalorder %s20, 1
      %p37 = por %p35, %p36
      %p38 = scmp.ne.s32.totalorder %s30, %s33
      %p39 = scmp.eq.s32.totalorder %s20, 0
      %p40 = por %p38, %p39
      %p41 = scmp.ne.s32.totalorder %s30, %s33
      %p42 = scmp.eq.s32.totalorder %s25, 1
      %p43 = por %p41, %p42
      %p44 = scmp.ne.s32.totalorder %s33, %s34
      %p45 = scmp.eq.s32.totalorder %s25, 0
      %p46 = por %p44, %p45
      %p47 = scmp.ne.s32.totalorder %s33, %s34
      %p48 = scmp.eq.s32.totalorder %s26, 1
      %p49 = por %p47, %p48
      %p51 = scmp.ne.s32.totalorder %s34, %s50
      %p52 = scmp.eq.s32.totalorder %s26, 0
      %p53 = por %p51, %p52
      %s55 = sadd.s32 %s54, 1
      %p58 = scmp.eq.s32.totalorder %s20, 1
      %p59 = scmp.ne.s32.totalorder %s54, %s56
      %p60 = scmp.eq.s32.totalorder %s20, 0
      %p61 = por %p59, %p60
      %p62 = scmp.ne.s32.totalorder %s54, %s56
      %p63 = scmp.eq.s32.totalorder %s25, 1
      %p64 = por %p62, %p63
      %p65 = scmp.ne.s32.totalorder %s56, %s57
      %p66 = scmp.eq.s32.totalorder %s25, 0
      %p67 = por %p65, %p66
      %p68 = scmp.ne.s32.totalorder %s56, %s57
      %p69 = scmp.eq.s32.totalorder %s26, 1
      %p70 = por %p68, %p69
      %p72 = scmp.ne.s32.totalorder %s57, %s71
      %p73 = scmp.eq.s32.totalorder %s26, 0
      %p74 = por %p72, %p73
      %s76 = sadd.s32 %s75, 1
      %p79 = scmp.eq.s32.totalorder %s20, 1
      %p80 = scmp.ne.s32.totalorder %s75, %s77
      %p81 = scmp.eq.s32.totalorder %s20, 0
      %p82 = por %p80, %p81
      %p83 = scmp.ne.s32.totalorder %s75, %s77
      %p84 = scmp.eq.s32.totalorder %s25, 1
      %p85 = por %p83, %p84
      %p86 = scmp.ne.s32.totalorder %s77, %s78
      %p87 = scmp.eq.s32.totalorder %s25, 0
      %p88 = por %p86, %p87
      %p89 = scmp.ne.s32.totalorder %s77, %s78
      %p90 = scmp.eq.s32.totalorder %s26, 1
      %p91 = por %p89, %p90
      %p93 = scmp.ne.s32.totalorder %s78, %s92
      %p94 = scmp.eq.s32.totalorder %s26, 0
      %p95 = por %p93, %p94
      %s97 = sadd.s32 %s96, 1
      %p100 = scmp.eq.s32.totalorder %s20, 1
      %p101 = scmp.ne.s32.totalorder %s96, %s98
      %p102 = scmp.eq.s32.totalorder %s20, 0
      %p103 = por %p101, %p102
      %p104 = scmp.ne.s32.totalorder %s96, %s98
      %p105 = scmp.eq.s32.totalorder %s25, 1
      %p106 = por %p104, %p105
      %p107 = scmp.ne.s32.totalorder %s98, %s99
      %p108 = scmp.eq.s32.totalorder %s25, 0
      %p109 = por %p107, %p108
      %p110 = scmp.ne.s32.totalorder %s98, %s99
      %p111 = scmp.eq.s32.totalorder %s26, 1
      %p112 = por %p110, %p111
      %p114 = scmp.ne.s32.totalorder %s99, %s113
      %p115 = scmp.eq.s32.totalorder %s26, 0
      %p116 = por %p114, %p115
      %s118 = sadd.s32 %s117, 1
      %p121 = scmp.eq.s32.totalorder %s20, 1
      %p122 = scmp.ne.s32.totalorder %s117, %s119
      %p123 = scmp.eq.s32.totalorder %s20, 0
      %p124 = por %p122, %p123
      %p125 = scmp.ne.s32.totalorder %s117, %s119
      %p126 = scmp.eq.s32.totalorder %s25, 1
      %p127 = por %p125, %p126
      %p128 = scmp.ne.s32.totalorder %s119, %s120
      %p129 = scmp.eq.s32.totalorder %s25, 0
      %p130 = por %p128, %p129
      %p131 = scmp.ne.s32.totalorder %s119, %s120
      %p132 = scmp.eq.s32.totalorder %s26, 1
      %p133 = por %p131, %p132
      %p135 = scmp.ne.s32.totalorder %s120, %s134
      %p136 = scmp.eq.s32.totalorder %s26, 0
      %p137 = por %p135, %p136
      %s139 = sadd.s32 %s138, 1
      %p142 = scmp.eq.s32.totalorder %s20, 1
      %p143 = scmp.ne.s32.totalorder %s138, %s140
      %p144 = scmp.eq.s32.totalorder %s20, 0
      %p145 = por %p143, %p144
      %p146 = scmp.ne.s32.totalorder %s138, %s140
      %p147 = scmp.eq.s32.totalorder %s25, 1
      %p148 = por %p146, %p147
      %p149 = scmp.ne.s32.totalorder %s140, %s141
      %p150 = scmp.eq.s32.totalorder %s25, 0
      %p151 = por %p149, %p150
      %p152 = scmp.ne.s32.totalorder %s140, %s141
      %p153 = scmp.eq.s32.totalorder %s26, 1
      %p154 = por %p152, %p153
      %p156 = scmp.ne.s32.totalorder %s141, %s155
      %p157 = scmp.eq.s32.totalorder %s26, 0
      %p158 = por %p156, %p157
      %s160 = sadd.s32 %s159, 1
      %p163 = scmp.eq.s32.totalorder %s20, 1
      %p164 = scmp.ne.s32.totalorder %s159, %s161
      %p165 = scmp.eq.s32.totalorder %s20, 0
      %p166 = por %p164, %p165
      %p167 = scmp.ne.s32.totalorder %s159, %s161
      %p168 = scmp.eq.s32.totalorder %s25, 1
      %p169 = por %p167, %p168
      %p170 = scmp.ne.s32.totalorder %s161, %s162
      %p171 = scmp.eq.s32.totalorder %s25, 0
      %p172 = por %p170, %p171
      %p173 = scmp.ne.s32.totalorder %s161, %s162
      %p174 = scmp.eq.s32.totalorder %s26, 1
      %p175 = por %p173, %p174
      %p177 = scmp.ne.s32.totalorder %s162, %s176
      %p178 = scmp.eq.s32.totalorder %s26, 0
      %p179 = por %p177, %p178
      %s180 = ssub.s32 %s20, %s27
      %p181 = scmp.eq.s32.totalorder %s180, 0
      %s183 = sadd.s32 %s182, 1
      %s184 = scalar_select %p181, %s182, %s183
      %p187 = pneg %p181
      %p188 = scmp.eq.s32.totalorder %s20, 1
      %p189 = por %p187, %p188
      %p190 = scmp.ne.s32.totalorder %s182, %s185
      %p191 = scmp.eq.s32.totalorder %s20, 0
      %p192 = por %p190, %p191
      %p193 = scmp.ne.s32.totalorder %s182, %s185
      %p194 = scmp.eq.s32.totalorder %s25, 1
      %p195 = por %p193, %p194
      %p196 = scmp.ne.s32.totalorder %s185, %s186
      %p197 = scmp.eq.s32.totalorder %s25, 0
      %p198 = por %p196, %p197
      %p199 = scmp.ne.s32.totalorder %s185, %s186
      %p200 = scmp.eq.s32.totalorder %s26, 1
      %p201 = por %p199, %p200
      %p203 = scmp.ne.s32.totalorder %s186, %s202
      %p204 = scmp.eq.s32.totalorder %s26, 0
      %p205 = por %p203, %p204
      %p206 = scmp.le.s32.totalorder 1, %s20
      %p207 = scmp.lt.s32.totalorder %s20, 3
      %p208 = pnand %p206, %p207
      %p209 = pneg %p208
      // Predicated region
      $region9: #{tpu_custom_call.1} parent=5 // pred_check
        _
      $region10: #{tpu_custom_call.1} parent=5 // pred_check_branch
        %211 = sbr.rel (%p208) target = $region12
      $region11: #{tpu_custom_call.1} parent=5 // pred_region
        %s212 = ssub.s32 %s20, 1
        // Predicated region
        $region13: #{tpu_custom_call.1} parent=11 // pred_check
          %p213 = pneg %p67
        $region14: #{tpu_custom_call.1} parent=11 // pred_check_branch
          %215 = sbr.rel (%p213) target = $region16
        $region15: #{tpu_custom_call.1} parent=11 // pred_region
          _
        $region16: #{tpu_custom_call.1} parent=11 // pred_fallthru
          _
        // Predicated region
        $region17: #{tpu_custom_call.1} parent=11 // pred_check
          %p216 = pneg %p88
        $region18: #{tpu_custom_call.1} parent=11 // pred_check_branch
          %218 = sbr.rel (%p216) target = $region20
        $region19: #{tpu_custom_call.1} parent=11 // pred_region
          _
        $region20: #{tpu_custom_call.1} parent=11 // pred_fallthru
          _
        // Predicated region
        $region21: #{tpu_custom_call.1} parent=11 // pred_check
          %p219 = pneg %p109
        $region22: #{tpu_custom_call.1} parent=11 // pred_check_branch
          %221 = sbr.rel (%p219) target = $region24
        $region23: #{tpu_custom_call.1} parent=11 // pred_region
          %s223 = ssub.s32 256, 256
          %224 = vsyncadd [#allocation6], %s223
          %s225 = sshll.u32 [#allocation5], 4
          %s226 = int_to_ptr.vmem [resolvable:$true] %s225
          %231 = dma.hbm_to_vmem [thread:$0]  %s3, 256, %s226, [#allocation6], 64, 64, 4
        $region24: #{tpu_custom_call.1} parent=11 // pred_fallthru
          _
        // Predicated region
        $region25: #{tpu_custom_call.1} parent=11 // pred_check
          %p232 = pneg %p130
        $region26: #{tpu_custom_call.1} parent=11 // pred_check_branch
          %234 = sbr.rel (%p232) target = $region28
        $region27: #{tpu_custom_call.1} parent=11 // pred_region
          %s236 = ssub.s32 16, 16
          %237 = vsyncadd [#allocation6], %s236
          %s239 = sshll.u32 [#allocation7], 4
          %s240 = int_to_ptr.vmem [resolvable:$true] %s239
          %242 = dma.hbm_to_vmem [thread:$0]  %s4, 16, %s240, [#allocation6]
        $region28: #{tpu_custom_call.1} parent=11 // pred_fallthru
          _
        // Predicated region
        $region29: #{tpu_custom_call.1} parent=11 // pred_check
          %p243 = pneg %p151
        $region30: #{tpu_custom_call.1} parent=11 // pred_check_branch
          %245 = sbr.rel (%p243) target = $region32
        $region31: #{tpu_custom_call.1} parent=11 // pred_region
          _
        $region32: #{tpu_custom_call.1} parent=11 // pred_fallthru
          _
        // Predicated region
        $region33: #{tpu_custom_call.1} parent=11 // pred_check
          %p246 = pneg %p172
        $region34: #{tpu_custom_call.1} parent=11 // pred_check_branch
          %248 = sbr.rel (%p246) target = $region36
        $region35: #{tpu_custom_call.1} parent=11 // pred_region
          _
        $region36: #{tpu_custom_call.1} parent=11 // pred_fallthru
          _
      $region12: #{tpu_custom_call.1} parent=5 // pred_fallthru
        _
      %p249 = scmp.lt.s32.totalorder %s20, 2
      // Predicated region
      $region37: #{tpu_custom_call.1} parent=5 // pred_check
        %p250 = pneg %p249
      $region38: #{tpu_custom_call.1} parent=5 // pred_check_branch
        %252 = sbr.rel (%p250) target = $region40
      $region39: #{tpu_custom_call.1} parent=5 // pred_region
        // Predicated region
        $region41: #{tpu_custom_call.1} parent=39 // pred_check
          %p253 = pneg %p40
        $region42: #{tpu_custom_call.1} parent=39 // pred_check_branch
          %255 = sbr.rel (%p253) target = $region44
        $region43: #{tpu_custom_call.1} parent=39 // pred_region
          %s256 = sand.u32 %s30, 1
          %s257 = scalar_lea.sflag [#allocation3], %s256
          %s258 = sand.u32 %s30, 1
          %s259 = smul.addr %s258, 8
          %s260 = scalar_lea.vmem [#allocation2], %s259
          %s262 = ssub.s32 128, 128
          %263 = vsyncadd %s257, %s262
          %s264 = smul.addr %s20, 128
          %s265 = scalar_lea.hbm %s0, %s264
          %s267 = sshll.u32 %s260, 4
          %s268 = int_to_ptr.vmem [resolvable:$true] %s267
          %270 = dma.hbm_to_vmem [thread:$0]  %s265, 128, %s268, %s257
        $region44: #{tpu_custom_call.1} parent=39 // pred_fallthru
          _
      $region40: #{tpu_custom_call.1} parent=5 // pred_fallthru
        _
      %p271 = scmp.le.s32.totalorder 1, %s20
      %p272 = scmp.lt.s32.totalorder %s20, 3
      %p273 = pnand %p271, %p272
      %p274 = pneg %p273
      // Predicated region
      $region45: #{tpu_custom_call.1} parent=5 // pred_check
        _
      $region46: #{tpu_custom_call.1} parent=5 // pred_check_branch
        %276 = sbr.rel (%p273) target = $region48
      $region47: #{tpu_custom_call.1} parent=5 // pred_region
        %s277 = ssub.s32 %s20, 1
        %s278 = sand.u32 %s33, 1
        %s279 = scalar_lea.sflag [#allocation3], %s278
        %s280 = sand.u32 %s33, 1
        %s281 = smul.addr %s280, 8
        %s282 = scalar_lea.vmem [#allocation2], %s281
        // Predicated region
        $region49: #{tpu_custom_call.1} parent=47 // pred_check
          %p283 = pneg %p46
        $region50: #{tpu_custom_call.1} parent=47 // pred_check_branch
          %285 = sbr.rel (%p283) target = $region52
        $region51: #{tpu_custom_call.1} parent=47 // pred_region
          %286 = dma.done %s279, 128
        $region52: #{tpu_custom_call.1} parent=47 // pred_fallthru
          _
        // Predicated region
        $region53: #{tpu_custom_call.1} parent=47 // pred_check
          %p287 = pneg %p109
        $region54: #{tpu_custom_call.1} parent=47 // pred_check_branch
          %289 = sbr.rel (%p287) target = $region56
        $region55: #{tpu_custom_call.1} parent=47 // pred_region
          %290 = dma.done [#allocation6], 256
        $region56: #{tpu_custom_call.1} parent=47 // pred_fallthru
          _
        // Predicated region
        $region57: #{tpu_custom_call.1} parent=47 // pred_check
          %p291 = pneg %p130
        $region58: #{tpu_custom_call.1} parent=47 // pred_check_branch
          %293 = sbr.rel (%p291) target = $region60
        $region59: #{tpu_custom_call.1} parent=47 // pred_region
          %294 = dma.done [#allocation6], 16
        $region60: #{tpu_custom_call.1} parent=47 // pred_fallthru
          _
        %s295 = sand.u32 %s33, 1
        %s296 = scalar_lea.sflag [#allocation3], %s295
        %s297 = sand.u32 %s33, 1
        %s298 = smul.addr %s297, 8
        %s299 = scalar_lea.vmem [#allocation2], %s298
        %p300 = pneg %p46
        %p301 = pneg %p43
        %p302 = pneg %p67
        %p303 = pneg %p64
        %p304 = pneg %p88
        %p305 = pneg %p85
        %p306 = pneg %p109
        %p307 = pneg %p106
        %p308 = pneg %p130
        %p309 = pneg %p127
        %p310 = pneg %p151
        %p311 = pneg %p148
        %p312 = pneg %p172
        %p313 = pneg %p169
        %p314 = pneg %p198
        %p315 = pneg %p195
        %s316 = sand.u32 %s185, 1
        %s317 = scalar_lea.sflag [#allocation4], %s316
        %s318 = sand.u32 %s185, 1
        %s319 = smul.addr %s318, 8
        %s320 = scalar_lea.vmem [#allocation8], %s319
        %v322 = vld [vmem:[%s282] sm:$0xff]
        %vm323 = vcmask 261120
        %v324 = vsel %vm323, %v322, 0.0
        %325 = vadd.xlane.f32.xlu0 %v324
        %v326 = vpop.xlane.xlu0 %325
        %v327 = vrcp.pop 32.0
        %v328 = vmul.f32 %v326, %v327
        %v329 = vsub.f32 %v322, %v328
        %v330 = vmul.f32 %v329, %v329
        %v331 = vsel %vm323, %v330, 0.0
        %332 = vadd.xlane.f32.xlu0 %v331
        %v333 = vpop.xlane.xlu0 %332
        %v334 = vmul.f32 %v333, %v327
        %v335 = vadd.f32 %v334, 1e-05
        %v336 = vrsqrt.pop %v335
        %v337 = vmul.f32 %v329, %v336
        %v338 = vld [vmem:[%s1] sm:$0x1]
        %v340 = vlaneseq
        %v341 = vshrl.u32 %v340, 7
        %v342 = vsub.s32 0, %v341
        %v343 = vrot.slane %v338, %v342
        %v345 = vmul.f32 %v337, %v343
        %v346 = vld [vmem:[%s2] sm:$0x1]
        %v348 = vlaneseq
        %v349 = vshrl.u32 %v348, 7
        %v350 = vsub.s32 0, %v349
        %v351 = vrot.slane %v346, %v350
        %v353 = vadd.f32 %v345, %v351
        %v354 = vpack.c.bf16 %v353, %v353
        %v355 = vld [vmem:[#allocation5] sm:$0xf]
        %v356 = vld [vmem:[#allocation5 + $0x4] sm:$0xf]
        %v357 = vld [vmem:[#allocation5 + $0x8] sm:$0xf]
        %v358 = vld [vmem:[#allocation5 + $0xc] sm:$0xf]
        %v359 = vld [vmem:[#allocation7] sm:$0x1]
        %v361 = vlaneseq
        %v362 = vshrl.u32 %v361, 7
        %v363 = vsub.s32 0, %v362
        %v364 = vrot.slane %v359, %v363
        %v370 = vunpack.c.l.b16 %v355
        %v371 = vunpack.c.l.b16 %v356
        %v372 = vunpack.c.l.b16 %v357
        %v373 = vunpack.c.l.b16 %v358
        %v374 = vpack.c.b16 %v371, %v370
        %v375 = vpack.c.b16 %v373, %v372
        %v379 = vsel %vm323, %v354, 0
        %381 = vmatprep.subr.bf16.mxu0 0
        %382 = vmatpush1.bf16.msra.mxu0 %v374
        %383 = vmatprep.subr.bf16.mxu0 0
        %384 = vmatpush1.bf16.msra.mxu0 %v375
        %385 = vmatprep.subr.bf16.mxu0 0
        %386 = vmatpush1.bf16.msra.mxu0 0
        %387 = vmatprep.subr.bf16.mxu0 0
        %388 = vmatpush1.bf16.msra.mxu0 0
        %389 = vmatprep.subr.bf16.mxu0 0
        %390 = vmatpush1.bf16.msra.mxu0 0
        %391 = vmatprep.subr.bf16.mxu0 0
        %392 = vmatpush1.bf16.msra.mxu0 0
        %393 = vmatprep.subr.bf16.mxu0 0
        %394 = vmatpush1.bf16.msra.mxu0 0
        %395 = vmatprep.subr.bf16.mxu0 0
        %396 = vmatpush1.bf16.msra.mxu0 0
        %397 = vmatprep.subr.bf16.mxu0 0
        %398 = vmatpush1.bf16.msra.mxu0 0
        %399 = vmatprep.subr.bf16.mxu0 0
        %400 = vmatpush1.bf16.msra.mxu0 0
        %401 = vmatprep.subr.bf16.mxu0 0
        %402 = vmatpush1.bf16.msra.mxu0 0
        %403 = vmatprep.subr.bf16.mxu0 0
        %404 = vmatpush1.bf16.msra.mxu0 0
        %405 = vmatprep.subr.bf16.mxu0 0
        %406 = vmatpush1.bf16.msra.mxu0 0
        %407 = vmatprep.subr.bf16.mxu0 0
        %408 = vmatpush1.bf16.msra.mxu0 0
        %409 = vmatprep.subr.bf16.mxu0 0
        %410 = vmatpush1.bf16.msra.mxu0 0
        %411 = vmatprep.subr.bf16.mxu0 0
        %412 = vmatpush1.bf16.msra.mxu0 0
        %413 = vmatprep.mubr.bf16.mxu0 0
        %414 = vmatmul.mubr.bf16.gmra.mrb[0].mxu0 %v379
        %v415 = vpop.f32.mrb[0].mxu0
        %v416 = vadd.f32 %v364, %v415
        %v417 = vpop.f32.mrb[0].mxu0
        %v418 = vpop.f32.mrb[0].mxu0
        %v419 = vpop.f32.mrb[0].mxu0
        %420 = vdwg.mxu0
        %v421 = vpack.c.bf16 %v416, %v416
        %423 = vrot.lane.b32.xlu0 %v421, 96
        %v424 = vpop.permute.xlu0 %423
        %vm425 = vcmask 64512
        %v427 = vsel %vm425, %v421, 0
        %v430 = vsel %vm425, %v424, 0
        %432 = vmatprep.subr.bf16.mxu0 0
        %433 = vmatpush1.bf16.xpose.msra.mxu0 %v430
        %434 = vmatprep.subr.bf16.mxu0 0
        %435 = vmatpush1.bf16.xpose.msra.mxu0 0
        %436 = vmatprep.subr.bf16.mxu0 0
        %437 = vmatpush1.bf16.xpose.msra.mxu0 0
        %438 = vmatprep.subr.bf16.mxu0 0
        %439 = vmatpush1.bf16.xpose.msra.mxu0 0
        %440 = vmatprep.subr.bf16.mxu0 0
        %441 = vmatpush1.bf16.xpose.msra.mxu0 0
        %442 = vmatprep.subr.bf16.mxu0 0
        %443 = vmatpush1.bf16.xpose.msra.mxu0 0
        %444 = vmatprep.subr.bf16.mxu0 0
        %445 = vmatpush1.bf16.xpose.msra.mxu0 0
        %446 = vmatprep.subr.bf16.mxu0 0
        %447 = vmatpush1.bf16.xpose.msra.mxu0 0
        %448 = vmatprep.subr.bf16.mxu0 0
        %449 = vmatpush1.bf16.xpose.msra.mxu0 0
        %450 = vmatprep.subr.bf16.mxu0 0
        %451 = vmatpush1.bf16.xpose.msra.mxu0 0
        %452 = vmatprep.subr.bf16.mxu0 0
        %453 = vmatpush1.bf16.xpose.msra.mxu0 0
        %454 = vmatprep.subr.bf16.mxu0 0
        %455 = vmatpush1.bf16.xpose.msra.mxu0 0
        %456 = vmatprep.subr.bf16.mxu0 0
        %457 = vmatpush1.bf16.xpose.msra.mxu0 0
        %458 = vmatprep.subr.bf16.mxu0 0
        %459 = vmatpush1.bf16.xpose.msra.mxu0 0
        %460 = vmatprep.subr.bf16.mxu0 0
        %461 = vmatpush1.bf16.xpose.msra.mxu0 0
        %462 = vmatprep.subr.bf16.mxu0 0
        %463 = vmatpush1.bf16.xpose.msra.mxu0 0
        %464 = vmatprep.mubr.bf16.mxu0 0
        %465 = vmatmul.mubr.bf16.gmra.mrb[0].mxu0 %v427
        %v466 = vpop.f32.mrb[0].mxu0
        %v467 = vadd.f32 0.0, %v466
        %v468 = vpop.f32.mrb[0].mxu0
        %v469 = vpop.f32.mrb[0].mxu0
        %v470 = vpop.f32.mrb[0].mxu0
        %471 = vdwg.mxu0
        %v472 = vmul.f32 %v467, 0.35355338
        %v473 = vsel %vm425, %v472, -inf
        %474 = vmax.xlane.f32.xlu0 %v473
        %v475 = vpop.xlane.xlu0 %474
        %v476 = vsub.f32 %v472, %v475
        %v477 = vmul.f32 %v476, 1.442695
        %v478 = vpow.pop %v477
        %v479 = vsel %vm425, %v478, 0.0
        %480 = vadd.xlane.f32.xlu0 %v479
        %v481 = vpop.xlane.xlu0 %480
        %v482 = vrcp.pop %v481
        %v483 = vmul.f32 %v478, %v482
        %v484 = vpack.c.bf16 %v483, %v483
        %485 = vrot.lane.b32.xlu0 %v421, 64
        %v486 = vpop.permute.xlu0 %485
        %v488 = vsel %vm425, %v484, 0
        %vm490 = vcmask 1043456
        %v492 = vsel %vm490, %v486, 0
        %494 = vmatprep.subr.bf16.mxu0 0
        %495 = vmatpush1.bf16.msra.mxu0 %v492
        %496 = vmatprep.subr.bf16.mxu0 0
        %497 = vmatpush1.bf16.msra.mxu0 0
        %498 = vmatprep.subr.bf16.mxu0 0
        %499 = vmatpush1.bf16.msra.mxu0 0
        %500 = vmatprep.subr.bf16.mxu0 0
        %501 = vmatpush1.bf16.msra.mxu0 0
        %502 = vmatprep.subr.bf16.mxu0 0
        %503 = vmatpush1.bf16.msra.mxu0 0
        %504 = vmatprep.subr.bf16.mxu0 0
        %505 = vmatpush1.bf16.msra.mxu0 0
        %506 = vmatprep.subr.bf16.mxu0 0
        %507 = vmatpush1.bf16.msra.mxu0 0
        %508 = vmatprep.subr.bf16.mxu0 0
        %509 = vmatpush1.bf16.msra.mxu0 0
        %510 = vmatprep.subr.bf16.mxu0 0
        %511 = vmatpush1.bf16.msra.mxu0 0
        %512 = vmatprep.subr.bf16.mxu0 0
        %513 = vmatpush1.bf16.msra.mxu0 0
        %514 = vmatprep.subr.bf16.mxu0 0
        %515 = vmatpush1.bf16.msra.mxu0 0
        %516 = vmatprep.subr.bf16.mxu0 0
        %517 = vmatpush1.bf16.msra.mxu0 0
        %518 = vmatprep.subr.bf16.mxu0 0
        %519 = vmatpush1.bf16.msra.mxu0 0
        %520 = vmatprep.subr.bf16.mxu0 0
        %521 = vmatpush1.bf16.msra.mxu0 0
        %522 = vmatprep.subr.bf16.mxu0 0
        %523 = vmatpush1.bf16.msra.mxu0 0
        %524 = vmatprep.subr.bf16.mxu0 0
        %525 = vmatpush1.bf16.msra.mxu0 0
        %526 = vmatprep.mubr.bf16.mxu0 0
        %527 = vmatmul.mubr.bf16.gmra.mrb[0].mxu0 %v488
        %v528 = vpop.f32.mrb[0].mxu0
        %v529 = vadd.f32 0.0, %v528
        %v530 = vpop.f32.mrb[0].mxu0
        %v531 = vpop.f32.mrb[0].mxu0
        %v532 = vpop.f32.mrb[0].mxu0
        %533 = vdwg.mxu0
        %v534 = vpack.c.bf16 %v529, %v529
        %v535 = vld [vmem:[%s5] sm:$0xf]
        %536 = vrot.lane.b32.xlu0 %v421, 120
        %v537 = vpop.permute.xlu0 %536
        %538 = vrot.lane.b32.xlu0 %v421, 88
        %v539 = vpop.permute.xlu0 %538
        %v541 = vsel %vm425, %v537, 0
        %v544 = vsel %vm425, %v539, 0
        %546 = vmatprep.subr.bf16.mxu0 0
        %547 = vmatpush1.bf16.xpose.msra.mxu0 %v544
        %548 = vmatprep.subr.bf16.mxu0 0
        %549 = vmatpush1.bf16.xpose.msra.mxu0 0
        %550 = vmatprep.subr.bf16.mxu0 0
        %551 = vmatpush1.bf16.xpose.msra.mxu0 0
        %552 = vmatprep.subr.bf16.mxu0 0
        %553 = vmatpush1.bf16.xpose.msra.mxu0 0
        %554 = vmatprep.subr.bf16.mxu0 0
        %555 = vmatpush1.bf16.xpose.msra.mxu0 0
        %556 = vmatprep.subr.bf16.mxu0 0
        %557 = vmatpush1.bf16.xpose.msra.mxu0 0
        %558 = vmatprep.subr.bf16.mxu0 0
        %559 = vmatpush1.bf16.xpose.msra.mxu0 0
        %560 = vmatprep.subr.bf16.mxu0 0
        %561 = vmatpush1.bf16.xpose.msra.mxu0 0
        %562 = vmatprep.subr.bf16.mxu0 0
        %563 = vmatpush1.bf16.xpose.msra.mxu0 0
        %564 = vmatprep.subr.bf16.mxu0 0
        %565 = vmatpush1.bf16.xpose.msra.mxu0 0
        %566 = vmatprep.subr.bf16.mxu0 0
        %567 = vmatpush1.bf16.xpose.msra.mxu0 0
        %568 = vmatprep.subr.bf16.mxu0 0
        %569 = vmatpush1.bf16.xpose.msra.mxu0 0
        %570 = vmatprep.subr.bf16.mxu0 0
        %571 = vmatpush1.bf16.xpose.msra.mxu0 0
        %572 = vmatprep.subr.bf16.mxu0 0
        %573 = vmatpush1.bf16.xpose.msra.mxu0 0
        %574 = vmatprep.subr.bf16.mxu0 0
        %575 = vmatpush1.bf16.xpose.msra.mxu0 0
        %576 = vmatprep.subr.bf16.mxu0 0
        %577 = vmatpush1.bf16.xpose.msra.mxu0 0
        %578 = vmatprep.mubr.bf16.mxu0 0
        %579 = vmatmul.mubr.bf16.gmra.mrb[0].mxu0 %v541
        %v580 = vpop.f32.mrb[0].mxu0
        %v581 = vadd.f32 0.0, %v580
        %v582 = vpop.f32.mrb[0].mxu0
        %v583 = vpop.f32.mrb[0].mxu0
        %v584 = vpop.f32.mrb[0].mxu0
        %585 = vdwg.mxu0
        %v586 = vmul.f32 %v581, 0.35355338
        %v587 = vsel %vm425, %v586, -inf
        %588 = vmax.xlane.f32.xlu0 %v587
        %v589 = vpop.xlane.xlu0 %588
        %v590 = vsub.f32 %v586, %v589
        %v591 = vmul.f32 %v590, 1.442695
        %v592 = vpow.pop %v591
        %v593 = vsel %vm425, %v592, 0.0
        %594 = vadd.xlane.f32.xlu0 %v593
        %v595 = vpop.xlane.xlu0 %594
        %v596 = vrcp.pop %v595
        %v597 = vmul.f32 %v592, %v596
        %v598 = vpack.c.bf16 %v597, %v597
        %599 = vrot.lane.b32.xlu0 %v421, 56
        %v600 = vpop.permute.xlu0 %599
        %v602 = vsel %vm425, %v598, 0
        %v605 = vsel %vm490, %v600, 0
        %607 = vmatprep.subr.bf16.mxu0 0
        %608 = vmatpush1.bf16.msra.mxu0 %v605
        %609 = vmatprep.subr.bf16.mxu0 0
        %610 = vmatpush1.bf16.msra.mxu0 0
        %611 = vmatprep.subr.bf16.mxu0 0
        %612 = vmatpush1.bf16.msra.mxu0 0
        %613 = vmatprep.subr.bf16.mxu0 0
        %614 = vmatpush1.bf16.msra.mxu0 0
        %615 = vmatprep.subr.bf16.mxu0 0
        %616 = vmatpush1.bf16.msra.mxu0 0
        %617 = vmatprep.subr.bf16.mxu0 0
        %618 = vmatpush1.bf16.msra.mxu0 0
        %619 = vmatprep.subr.bf16.mxu0 0
        %620 = vmatpush1.bf16.msra.mxu0 0
        %621 = vmatprep.subr.bf16.mxu0 0
        %622 = vmatpush1.bf16.msra.mxu0 0
        %623 = vmatprep.subr.bf16.mxu0 0
        %624 = vmatpush1.bf16.msra.mxu0 0
        %625 = vmatprep.subr.bf16.mxu0 0
        %626 = vmatpush1.bf16.msra.mxu0 0
        %627 = vmatprep.subr.bf16.mxu0 0
        %628 = vmatpush1.bf16.msra.mxu0 0
        %629 = vmatprep.subr.bf16.mxu0 0
        %630 = vmatpush1.bf16.msra.mxu0 0
        %631 = vmatprep.subr.bf16.mxu0 0
        %632 = vmatpush1.bf16.msra.mxu0 0
        %633 = vmatprep.subr.bf16.mxu0 0
        %634 = vmatpush1.bf16.msra.mxu0 0
        %635 = vmatprep.subr.bf16.mxu0 0
        %636 = vmatpush1.bf16.msra.mxu0 0
        %637 = vmatprep.subr.bf16.mxu0 0
        %638 = vmatpush1.bf16.msra.mxu0 0
        %639 = vmatprep.mubr.bf16.mxu0 0
        %640 = vmatmul.mubr.bf16.gmra.mrb[0].mxu0 %v602
        %v641 = vpop.f32.mrb[0].mxu0
        %v642 = vadd.f32 0.0, %v641
        %v643 = vpop.f32.mrb[0].mxu0
        %v644 = vpop.f32.mrb[0].mxu0
        %v645 = vpop.f32.mrb[0].mxu0
        %646 = vdwg.mxu0
        %v647 = vpack.c.bf16 %v642, %v642
        %v648 = vld [vmem:[%s5 + $0x4] sm:$0xf]
        %v650 = vsel %vm425, %v647, 0
        %v653 = vsel %vm490, %v648, 0
        %655 = vmatprep.subr.bf16.mxu0 0
        %656 = vmatpush1.bf16.msra.mxu0 %v653
        %657 = vmatprep.subr.bf16.mxu0 0
        %658 = vmatpush1.bf16.msra.mxu0 0
        %659 = vmatprep.subr.bf16.mxu0 0
        %660 = vmatpush1.bf16.msra.mxu0 0
        %661 = vmatprep.subr.bf16.mxu0 0
        %662 = vmatpush1.bf16.msra.mxu0 0
        %663 = vmatprep.subr.bf16.mxu0 0
        %664 = vmatpush1.bf16.msra.mxu0 0
        %665 = vmatprep.subr.bf16.mxu0 0
        %666 = vmatpush1.bf16.msra.mxu0 0
        %667 = vmatprep.subr.bf16.mxu0 0
        %668 = vmatpush1.bf16.msra.mxu0 0
        %669 = vmatprep.subr.bf16.mxu0 0
        %670 = vmatpush1.bf16.msra.mxu0 0
        %671 = vmatprep.subr.bf16.mxu0 0
        %672 = vmatpush1.bf16.msra.mxu0 0
        %673 = vmatprep.subr.bf16.mxu0 0
        %674 = vmatpush1.bf16.msra.mxu0 0
        %675 = vmatprep.subr.bf16.mxu0 0
        %676 = vmatpush1.bf16.msra.mxu0 0
        %677 = vmatprep.subr.bf16.mxu0 0
        %678 = vmatpush1.bf16.msra.mxu0 0
        %679 = vmatprep.subr.bf16.mxu0 0
        %680 = vmatpush1.bf16.msra.mxu0 0
        %681 = vmatprep.subr.bf16.mxu0 0
        %682 = vmatpush1.bf16.msra.mxu0 0
        %683 = vmatprep.subr.bf16.mxu0 0
        %684 = vmatpush1.bf16.msra.mxu0 0
        %685 = vmatprep.subr.bf16.mxu0 0
        %686 = vmatpush1.bf16.msra.mxu0 0
        %687 = vmatprep.mubr.bf16.mxu0 0
        %688 = vmatmul.mubr.bf16.gmra.mrb[0].mxu0 %v650
        %v689 = vpop.f32.mrb[0].mxu0
        %v690 = vadd.f32 0.0, %v689
        %v691 = vpop.f32.mrb[0].mxu0
        %v692 = vpop.f32.mrb[0].mxu0
        %v693 = vpop.f32.mrb[0].mxu0
        %694 = vdwg.mxu0
        %v696 = vsel %vm425, %v534, 0
        %v699 = vsel %vm490, %v535, 0
        %701 = vmatprep.subr.bf16.mxu0 0
        %702 = vmatpush1.bf16.msra.mxu0 %v699
        %703 = vmatprep.subr.bf16.mxu0 0
        %704 = vmatpush1.bf16.msra.mxu0 0
        %705 = vmatprep.subr.bf16.mxu0 0
        %706 = vmatpush1.bf16.msra.mxu0 0
        %707 = vmatprep.subr.bf16.mxu0 0
        %708 = vmatpush1.bf16.msra.mxu0 0
        %709 = vmatprep.subr.bf16.mxu0 0
        %710 = vmatpush1.bf16.msra.mxu0 0
        %711 = vmatprep.subr.bf16.mxu0 0
        %712 = vmatpush1.bf16.msra.mxu0 0
        %713 = vmatprep.subr.bf16.mxu0 0
        %714 = vmatpush1.bf16.msra.mxu0 0
        %715 = vmatprep.subr.bf16.mxu0 0
        %716 = vmatpush1.bf16.msra.mxu0 0
        %717 = vmatprep.subr.bf16.mxu0 0
        %718 = vmatpush1.bf16.msra.mxu0 0
        %719 = vmatprep.subr.bf16.mxu0 0
        %720 = vmatpush1.bf16.msra.mxu0 0
        %721 = vmatprep.subr.bf16.mxu0 0
        %722 = vmatpush1.bf16.msra.mxu0 0
        %723 = vmatprep.subr.bf16.mxu0 0
        %724 = vmatpush1.bf16.msra.mxu0 0
        %725 = vmatprep.subr.bf16.mxu0 0
        %726 = vmatpush1.bf16.msra.mxu0 0
        %727 = vmatprep.subr.bf16.mxu0 0
        %728 = vmatpush1.bf16.msra.mxu0 0
        %729 = vmatprep.subr.bf16.mxu0 0
        %730 = vmatpush1.bf16.msra.mxu0 0
        %731 = vmatprep.subr.bf16.mxu0 0
        %732 = vmatpush1.bf16.msra.mxu0 0
        %733 = vmatprep.mubr.bf16.mxu0 0
        %734 = vmatmul.mubr.bf16.gmra.mrb[0].mxu0 %v696
        %v735 = vpop.f32.mrb[0].mxu0
        %v736 = vadd.f32 %v690, %v735
        %v737 = vpop.f32.mrb[0].mxu0
        %v738 = vpop.f32.mrb[0].mxu0
        %v739 = vpop.f32.mrb[0].mxu0
        %740 = vdwg.mxu0
        %741 = vrot.lane.b32.xlu0 %v421, 112
        %v742 = vpop.permute.xlu0 %741
        %743 = vrot.lane.b32.xlu0 %v421, 80
        %v744 = vpop.permute.xlu0 %743
        %v746 = vsel %vm425, %v742, 0
        %v749 = vsel %vm425, %v744, 0
        %751 = vmatprep.subr.bf16.mxu0 0
        %752 = vmatpush1.bf16.xpose.msra.mxu0 %v749
        %753 = vmatprep.subr.bf16.mxu0 0
        %754 = vmatpush1.bf16.xpose.msra.mxu0 0
        %755 = vmatprep.subr.bf16.mxu0 0
        %756 = vmatpush1.bf16.xpose.msra.mxu0 0
        %757 = vmatprep.subr.bf16.mxu0 0
        %758 = vmatpush1.bf16.xpose.msra.mxu0 0
        %759 = vmatprep.subr.bf16.mxu0 0
        %760 = vmatpush1.bf16.xpose.msra.mxu0 0
        %761 = vmatprep.subr.bf16.mxu0 0
        %762 = vmatpush1.bf16.xpose.msra.mxu0 0
        %763 = vmatprep.subr.bf16.mxu0 0
        %764 = vmatpush1.bf16.xpose.msra.mxu0 0
        %765 = vmatprep.subr.bf16.mxu0 0
        %766 = vmatpush1.bf16.xpose.msra.mxu0 0
        %767 = vmatprep.subr.bf16.mxu0 0
        %768 = vmatpush1.bf16.xpose.msra.mxu0 0
        %769 = vmatprep.subr.bf16.mxu0 0
        %770 = vmatpush1.bf16.xpose.msra.mxu0 0
        %771 = vmatprep.subr.bf16.mxu0 0
        %772 = vmatpush1.bf16.xpose.msra.mxu0 0
        %773 = vmatprep.subr.bf16.mxu0 0
        %774 = vmatpush1.bf16.xpose.msra.mxu0 0
        %775 = vmatprep.subr.bf16.mxu0 0
        %776 = vmatpush1.bf16.xpose.msra.mxu0 0
        %777 = vmatprep.subr.bf16.mxu0 0
        %778 = vmatpush1.bf16.xpose.msra.mxu0 0
        %779 = vmatprep.subr.bf16.mxu0 0
        %780 = vmatpush1.bf16.xpose.msra.mxu0 0
        %781 = vmatprep.subr.bf16.mxu0 0
        %782 = vmatpush1.bf16.xpose.msra.mxu0 0
        %783 = vmatprep.mubr.bf16.mxu0 0
        %784 = vmatmul.mubr.bf16.gmra.mrb[0].mxu0 %v746
        %v785 = vpop.f32.mrb[0].mxu0
        %v786 = vadd.f32 0.0, %v785
        %v787 = vpop.f32.mrb[0].mxu0
        %v788 = vpop.f32.mrb[0].mxu0
        %v789 = vpop.f32.mrb[0].mxu0
        %790 = vdwg.mxu0
        %v791 = vmul.f32 %v786, 0.35355338
        %v792 = vsel %vm425, %v791, -inf
        %793 = vmax.xlane.f32.xlu0 %v792
        %v794 = vpop.xlane.xlu0 %793
        %v795 = vsub.f32 %v791, %v794
        %v796 = vmul.f32 %v795, 1.442695
        %v797 = vpow.pop %v796
        %v798 = vsel %vm425, %v797, 0.0
        %799 = vadd.xlane.f32.xlu0 %v798
        %v800 = vpop.xlane.xlu0 %799
        %v801 = vrcp.pop %v800
        %v802 = vmul.f32 %v797, %v801
        %v803 = vpack.c.bf16 %v802, %v802
        %804 = vrot.lane.b32.xlu0 %v421, 48
        %v805 = vpop.permute.xlu0 %804
        %v807 = vsel %vm425, %v803, 0
        %v810 = vsel %vm490, %v805, 0
        %812 = vmatprep.subr.bf16.mxu0 0
        %813 = vmatpush1.bf16.msra.mxu0 %v810
        %814 = vmatprep.subr.bf16.mxu0 0
        %815 = vmatpush1.bf16.msra.mxu0 0
        %816 = vmatprep.subr.bf16.mxu0 0
        %817 = vmatpush1.bf16.msra.mxu0 0
        %818 = vmatprep.subr.bf16.mxu0 0
        %819 = vmatpush1.bf16.msra.mxu0 0
        %820 = vmatprep.subr.bf16.mxu0 0
        %821 = vmatpush1.bf16.msra.mxu0 0
        %822 = vmatprep.subr.bf16.mxu0 0
        %823 = vmatpush1.bf16.msra.mxu0 0
        %824 = vmatprep.subr.bf16.mxu0 0
        %825 = vmatpush1.bf16.msra.mxu0 0
        %826 = vmatprep.subr.bf16.mxu0 0
        %827 = vmatpush1.bf16.msra.mxu0 0
        %828 = vmatprep.subr.bf16.mxu0 0
        %829 = vmatpush1.bf16.msra.mxu0 0
        %830 = vmatprep.subr.bf16.mxu0 0
        %831 = vmatpush1.bf16.msra.mxu0 0
        %832 = vmatprep.subr.bf16.mxu0 0
        %833 = vmatpush1.bf16.msra.mxu0 0
        %834 = vmatprep.subr.bf16.mxu0 0
        %835 = vmatpush1.bf16.msra.mxu0 0
        %836 = vmatprep.subr.bf16.mxu0 0
        %837 = vmatpush1.bf16.msra.mxu0 0
        %838 = vmatprep.subr.bf16.mxu0 0
        %839 = vmatpush1.bf16.msra.mxu0 0
        %840 = vmatprep.subr.bf16.mxu0 0
        %841 = vmatpush1.bf16.msra.mxu0 0
        %842 = vmatprep.subr.bf16.mxu0 0
        %843 = vmatpush1.bf16.msra.mxu0 0
        %844 = vmatprep.mubr.bf16.mxu0 0
        %845 = vmatmul.mubr.bf16.gmra.mrb[0].mxu0 %v807
        %v846 = vpop.f32.mrb[0].mxu0
        %v847 = vadd.f32 0.0, %v846
        %v848 = vpop.f32.mrb[0].mxu0
        %v849 = vpop.f32.mrb[0].mxu0
        %v850 = vpop.f32.mrb[0].mxu0
        %851 = vdwg.mxu0
        %v852 = vpack.c.bf16 %v847, %v847
        %v853 = vld [vmem:[%s5 + $0x8] sm:$0xf]
        %v855 = vsel %vm425, %v852, 0
        %v858 = vsel %vm490, %v853, 0
        %860 = vmatprep.subr.bf16.mxu0 0
        %861 = vmatpush1.bf16.msra.mxu0 %v858
        %862 = vmatprep.subr.bf16.mxu0 0
        %863 = vmatpush1.bf16.msra.mxu0 0
        %864 = vmatprep.subr.bf16.mxu0 0
        %865 = vmatpush1.bf16.msra.mxu0 0
        %866 = vmatprep.subr.bf16.mxu0 0
        %867 = vmatpush1.bf16.msra.mxu0 0
        %868 = vmatprep.subr.bf16.mxu0 0
        %869 = vmatpush1.bf16.msra.mxu0 0
        %870 = vmatprep.subr.bf16.mxu0 0
        %871 = vmatpush1.bf16.msra.mxu0 0
        %872 = vmatprep.subr.bf16.mxu0 0
        %873 = vmatpush1.bf16.msra.mxu0 0
        %874 = vmatprep.subr.bf16.mxu0 0
        %875 = vmatpush1.bf16.msra.mxu0 0
        %876 = vmatprep.subr.bf16.mxu0 0
        %877 = vmatpush1.bf16.msra.mxu0 0
        %878 = vmatprep.subr.bf16.mxu0 0
        %879 = vmatpush1.bf16.msra.mxu0 0
        %880 = vmatprep.subr.bf16.mxu0 0
        %881 = vmatpush1.bf16.msra.mxu0 0
        %882 = vmatprep.subr.bf16.mxu0 0
        %883 = vmatpush1.bf16.msra.mxu0 0
        %884 = vmatprep.subr.bf16.mxu0 0
        %885 = vmatpush1.bf16.msra.mxu0 0
        %886 = vmatprep.subr.bf16.mxu0 0
        %887 = vmatpush1.bf16.msra.mxu0 0
        %888 = vmatprep.subr.bf16.mxu0 0
        %889 = vmatpush1.bf16.msra.mxu0 0
        %890 = vmatprep.subr.bf16.mxu0 0
        %891 = vmatpush1.bf16.msra.mxu0 0
        %892 = vmatprep.mubr.bf16.mxu0 0
        %893 = vmatmul.mubr.bf16.gmra.mrb[0].mxu0 %v855
        %v894 = vpop.f32.mrb[0].mxu0
        %v895 = vadd.f32 0.0, %v894
        %v896 = vpop.f32.mrb[0].mxu0
        %v897 = vpop.f32.mrb[0].mxu0
        %v898 = vpop.f32.mrb[0].mxu0
        %899 = vdwg.mxu0
        %v900 = vadd.f32 %v736, %v895
        %901 = vrot.lane.b32.xlu0 %v421, 104
        %v902 = vpop.permute.xlu0 %901
        %903 = vrot.lane.b32.xlu0 %v421, 72
        %v904 = vpop.permute.xlu0 %903
        %v906 = vsel %vm425, %v902, 0
        %v909 = vsel %vm425, %v904, 0
        %911 = vmatprep.subr.bf16.mxu0 0
        %912 = vmatpush1.bf16.xpose.msra.mxu0 %v909
        %913 = vmatprep.subr.bf16.mxu0 0
        %914 = vmatpush1.bf16.xpose.msra.mxu0 0
        %915 = vmatprep.subr.bf16.mxu0 0
        %916 = vmatpush1.bf16.xpose.msra.mxu0 0
        %917 = vmatprep.subr.bf16.mxu0 0
        %918 = vmatpush1.bf16.xpose.msra.mxu0 0
        %919 = vmatprep.subr.bf16.mxu0 0
        %920 = vmatpush1.bf16.xpose.msra.mxu0 0
        %921 = vmatprep.subr.bf16.mxu0 0
        %922 = vmatpush1.bf16.xpose.msra.mxu0 0
        %923 = vmatprep.subr.bf16.mxu0 0
        %924 = vmatpush1.bf16.xpose.msra.mxu0 0
        %925 = vmatprep.subr.bf16.mxu0 0
        %926 = vmatpush1.bf16.xpose.msra.mxu0 0
        %927 = vmatprep.subr.bf16.mxu0 0
        %928 = vmatpush1.bf16.xpose.msra.mxu0 0
        %929 = vmatprep.subr.bf16.mxu0 0
        %930 = vmatpush1.bf16.xpose.msra.mxu0 0
        %931 = vmatprep.subr.bf16.mxu0 0
        %932 = vmatpush1.bf16.xpose.msra.mxu0 0
        %933 = vmatprep.subr.bf16.mxu0 0
        %934 = vmatpush1.bf16.xpose.msra.mxu0 0
        %935 = vmatprep.subr.bf16.mxu0 0
        %936 = vmatpush1.bf16.xpose.msra.mxu0 0
        %937 = vmatprep.subr.bf16.mxu0 0
        %938 = vmatpush1.bf16.xpose.msra.mxu0 0
        %939 = vmatprep.subr.bf16.mxu0 0
        %940 = vmatpush1.bf16.xpose.msra.mxu0 0
        %941 = vmatprep.subr.bf16.mxu0 0
        %942 = vmatpush1.bf16.xpose.msra.mxu0 0
        %943 = vmatprep.mubr.bf16.mxu0 0
        %944 = vmatmul.mubr.bf16.gmra.mrb[0].mxu0 %v906
        %v945 = vpop.f32.mrb[0].mxu0
        %v946 = vadd.f32 0.0, %v945
        %v947 = vpop.f32.mrb[0].mxu0
        %v948 = vpop.f32.mrb[0].mxu0
        %v949 = vpop.f32.mrb[0].mxu0
        %950 = vdwg.mxu0
        %v951 = vmul.f32 %v946, 0.35355338
        %v952 = vsel %vm425, %v951, -inf
        %953 = vmax.xlane.f32.xlu0 %v952
        %v954 = vpop.xlane.xlu0 %953
        %v955 = vsub.f32 %v951, %v954
        %v956 = vmul.f32 %v955, 1.442695
        %v957 = vpow.pop %v956
        %v958 = vsel %vm425, %v957, 0.0
        %959 = vadd.xlane.f32.xlu0 %v958
        %v960 = vpop.xlane.xlu0 %959
        %v961 = vrcp.pop %v960
        %v962 = vmul.f32 %v957, %v961
        %v963 = vpack.c.bf16 %v962, %v962
        %964 = vrot.lane.b32.xlu0 %v421, 40
        %v965 = vpop.permute.xlu0 %964
        %v967 = vsel %vm425, %v963, 0
        %v970 = vsel %vm490, %v965, 0
        %972 = vmatprep.subr.bf16.mxu0 0
        %973 = vmatpush1.bf16.msra.mxu0 %v970
        %974 = vmatprep.subr.bf16.mxu0 0
        %975 = vmatpush1.bf16.msra.mxu0 0
        %976 = vmatprep.subr.bf16.mxu0 0
        %977 = vmatpush1.bf16.msra.mxu0 0
        %978 = vmatprep.subr.bf16.mxu0 0
        %979 = vmatpush1.bf16.msra.mxu0 0
        %980 = vmatprep.subr.bf16.mxu0 0
        %981 = vmatpush1.bf16.msra.mxu0 0
        %982 = vmatprep.subr.bf16.mxu0 0
        %983 = vmatpush1.bf16.msra.mxu0 0
        %984 = vmatprep.subr.bf16.mxu0 0
        %985 = vmatpush1.bf16.msra.mxu0 0
        %986 = vmatprep.subr.bf16.mxu0 0
        %987 = vmatpush1.bf16.msra.mxu0 0
        %988 = vmatprep.subr.bf16.mxu0 0
        %989 = vmatpush1.bf16.msra.mxu0 0
        %990 = vmatprep.subr.bf16.mxu0 0
        %991 = vmatpush1.bf16.msra.mxu0 0
        %992 = vmatprep.subr.bf16.mxu0 0
        %993 = vmatpush1.bf16.msra.mxu0 0
        %994 = vmatprep.subr.bf16.mxu0 0
        %995 = vmatpush1.bf16.msra.mxu0 0
        %996 = vmatprep.subr.bf16.mxu0 0
        %997 = vmatpush1.bf16.msra.mxu0 0
        %998 = vmatprep.subr.bf16.mxu0 0
        %999 = vmatpush1.bf16.msra.mxu0 0
        %1000 = vmatprep.subr.bf16.mxu0 0
        %1001 = vmatpush1.bf16.msra.mxu0 0
        %1002 = vmatprep.subr.bf16.mxu0 0
        %1003 = vmatpush1.bf16.msra.mxu0 0
        %1004 = vmatprep.mubr.bf16.mxu0 0
        %1005 = vmatmul.mubr.bf16.gmra.mrb[0].mxu0 %v967
        %v1006 = vpop.f32.mrb[0].mxu0
        %v1007 = vadd.f32 0.0, %v1006
        %v1008 = vpop.f32.mrb[0].mxu0
        %v1009 = vpop.f32.mrb[0].mxu0
        %v1010 = vpop.f32.mrb[0].mxu0
        %1011 = vdwg.mxu0
        %v1012 = vpack.c.bf16 %v1007, %v1007
        %v1013 = vld [vmem:[%s5 + $0xc] sm:$0xf]
        %v1015 = vsel %vm425, %v1012, 0
        %v1018 = vsel %vm490, %v1013, 0
        %1020 = vmatprep.subr.bf16.mxu0 0
        %1021 = vmatpush1.bf16.msra.mxu0 %v1018
        %1022 = vmatprep.subr.bf16.mxu0 0
        %1023 = vmatpush1.bf16.msra.mxu0 0
        %1024 = vmatprep.subr.bf16.mxu0 0
        %1025 = vmatpush1.bf16.msra.mxu0 0
        %1026 = vmatprep.subr.bf16.mxu0 0
        %1027 = vmatpush1.bf16.msra.mxu0 0
        %1028 = vmatprep.subr.bf16.mxu0 0
        %1029 = vmatpush1.bf16.msra.mxu0 0
        %1030 = vmatprep.subr.bf16.mxu0 0
        %1031 = vmatpush1.bf16.msra.mxu0 0
        %1032 = vmatprep.subr.bf16.mxu0 0
        %1033 = vmatpush1.bf16.msra.mxu0 0
        %1034 = vmatprep.subr.bf16.mxu0 0
        %1035 = vmatpush1.bf16.msra.mxu0 0
        %1036 = vmatprep.subr.bf16.mxu0 0
        %1037 = vmatpush1.bf16.msra.mxu0 0
        %1038 = vmatprep.subr.bf16.mxu0 0
        %1039 = vmatpush1.bf16.msra.mxu0 0
        %1040 = vmatprep.subr.bf16.mxu0 0
        %1041 = vmatpush1.bf16.msra.mxu0 0
        %1042 = vmatprep.subr.bf16.mxu0 0
        %1043 = vmatpush1.bf16.msra.mxu0 0
        %1044 = vmatprep.subr.bf16.mxu0 0
        %1045 = vmatpush1.bf16.msra.mxu0 0
        %1046 = vmatprep.subr.bf16.mxu0 0
        %1047 = vmatpush1.bf16.msra.mxu0 0
        %1048 = vmatprep.subr.bf16.mxu0 0
        %1049 = vmatpush1.bf16.msra.mxu0 0
        %1050 = vmatprep.subr.bf16.mxu0 0
        %1051 = vmatpush1.bf16.msra.mxu0 0
        %1052 = vmatprep.mubr.bf16.mxu0 0
        %1053 = vmatmul.mubr.bf16.gmra.mrb[0].mxu0 %v1015
        %v1054 = vpop.f32.mrb[0].mxu0
        %v1055 = vadd.f32 0.0, %v1054
        %v1056 = vpop.f32.mrb[0].mxu0
        %v1057 = vpop.f32.mrb[0].mxu0
        %v1058 = vpop.f32.mrb[0].mxu0
        %1059 = vdwg.mxu0
        %v1060 = vadd.f32 %v900, %v1055
        %v1061 = vld [vmem:[%s6] sm:$0x1]
        %v1063 = vlaneseq
        %v1064 = vshrl.u32 %v1063, 7
        %v1065 = vsub.s32 0, %v1064
        %v1066 = vrot.slane %v1061, %v1065
        %v1068 = vadd.f32 %v1060, %v1066
        %1069 = vst.msk [vmem:[%s320] sm:$0xff] %vm323, %v1068
        %s1070 = sand.u32 %s185, 1
        %s1071 = scalar_lea.sflag [#allocation4], %s1070
        %s1072 = sand.u32 %s185, 1
        %s1073 = smul.addr %s1072, 8
        %s1074 = scalar_lea.vmem [#allocation8], %s1073
        // Predicated region
        $region61: #{tpu_custom_call.1} parent=47 // pred_check
          %p1075 = pneg %p195
        $region62: #{tpu_custom_call.1} parent=47 // pred_check_branch
          %1077 = sbr.rel (%p1075) target = $region64
        $region63: #{tpu_custom_call.1} parent=47 // pred_region
          %s1079 = ssub.s32 128, 128
          %1080 = vsyncadd %s1071, %s1079
          %s1081 = smul.addr %s25, 128
          %s1082 = scalar_lea.hbm %s7, %s1081
          %s1084 = sshll.u32 %s1074, 4
          %s1085 = int_to_ptr.vmem [resolvable:$true] %s1084
          %1087 = dma.vmem_to_hbm [thread:$0]  %s1085, 128, %s1082, %s1071
        $region64: #{tpu_custom_call.1} parent=47 // pred_fallthru
          _
      $region48: #{tpu_custom_call.1} parent=5 // pred_fallthru
        _
      %p1088 = scmp.le.s32.totalorder 2, %s20
      // Predicated region
      $region65: #{tpu_custom_call.1} parent=5 // pred_check
        %p1089 = pneg %p1088
      $region66: #{tpu_custom_call.1} parent=5 // pred_check_branch
        %1091 = sbr.rel (%p1089) target = $region68
      $region67: #{tpu_custom_call.1} parent=5 // pred_region
        %s1092 = ssub.s32 %s20, 2
        // Predicated region
        $region69: #{tpu_custom_call.1} parent=67 // pred_check
          %p1093 = pneg %p201
        $region70: #{tpu_custom_call.1} parent=67 // pred_check_branch
          %1095 = sbr.rel (%p1093) target = $region72
        $region71: #{tpu_custom_call.1} parent=67 // pred_region
          %s1096 = sand.u32 %s186, 1
          %s1097 = scalar_lea.sflag [#allocation4], %s1096
          %s1098 = sand.u32 %s186, 1
          %s1099 = smul.addr %s1098, 8
          %s1100 = scalar_lea.vmem [#allocation8], %s1099
          %1101 = dma.done %s1097, 128
        $region72: #{tpu_custom_call.1} parent=67 // pred_fallthru
          _
      $region68: #{tpu_custom_call.1} parent=5 // pred_fallthru
        _
    $region6: #{tpu_custom_call.1} parent=1 // loop_footer
      %s24 = sadd.s32 1, %s20
    $region7: #{tpu_custom_call.1} parent=1 // loop_footer_branch
      %19 = sbr.rel target = $region3
    $region8: #{tpu_custom_call.1} parent=1 // loop_exit
      _
    %1102 = vsyncpa [#allocation3], 1
    %s1103 = scalar_lea.sflag [#allocation3], 1
    %1104 = vsyncpa %s1103, 1
    %1105 = vsyncpa [#allocation6], 1
    %1106 = vsyncpa [#allocation4], 1
    %s1107 = scalar_lea.sflag [#allocation4], 1
    %1108 = vsyncpa %s1107, 1

</llo_original>
